<compile_context>
chip_gen: v5e
topology: v5e:2x2
jax: 0.10.0
libtpu: 0.0.40
codegen_flags: <defaults>
</compile_context>

<pallas_src>
import functools

import jax
import jax.numpy as jnp
from jax.experimental import pallas as pl
from jax.experimental.pallas import tpu as pltpu

_C1 = 0.01 ** 2
_C2 = 0.03 ** 2


def _ssim_kernel(x_ref, y_ref, o_ref, *, patch_size, pad, h, w, h_out, w_out):
    # x_ref / y_ref: (B, H, W) UNPADDED planes in VMEM; o_ref: (B, Ho, Wo).
    x = x_ref[...].astype(jnp.float32)
    y = y_ref[...].astype(jnp.float32)

    def reflect_pad(a):
        # ReflectionPad2d(pad), fused in-kernel (value concat, no extra HBM pass).
        if pad == 0:
            return a
        # vertical pad (second-to-last / sublane axis): rows pad..1 and H-2..H-1-pad
        top = [a[:, k:k + 1, :] for k in range(pad, 0, -1)]
        bot = [a[:, h - 1 - k:h - k, :] for k in range(1, pad + 1)]
        a = jnp.concatenate(top + [a] + bot, axis=1)
        # horizontal pad (last / lane axis)
        left = [a[:, :, k:k + 1] for k in range(pad, 0, -1)]
        right = [a[:, :, w - 1 - k:w - k] for k in range(1, pad + 1)]
        a = jnp.concatenate(left + [a] + right, axis=2)
        return a

    xp = reflect_pad(x)   # (B, Hp, Wp)
    yp = reflect_pad(y)

    def box_sum(a):
        # Separable P x P stride-1 box sum: (B, Hp, Wp) -> (B, Ho, Wo).
        v = a[:, 0:h_out, :]
        for i in range(1, patch_size):
            v = v + a[:, i:i + h_out, :]
        s = v[:, :, 0:w_out]
        for j in range(1, patch_size):
            s = s + v[:, :, j:j + w_out]
        return s

    inv = jnp.float32(1.0 / (patch_size * patch_size))
    mu_x = box_sum(xp) * inv
    mu_y = box_sum(yp) * inv
    sigma_x = box_sum(xp * xp) * inv - mu_x * mu_x
    sigma_y = box_sum(yp * yp) * inv - mu_y * mu_y
    sigma_xy = box_sum(xp * yp) * inv - mu_x * mu_y

    ssim_n = (2.0 * mu_x * mu_y + _C1) * (2.0 * sigma_xy + _C2)
    ssim_d = (mu_x * mu_x + mu_y * mu_y + _C1) * (sigma_x + sigma_y + _C2)
    # NOTE: pl.reciprocal(ssim_d, approx=True) would move the divide to the
    # idle EUP slot, but its ~1e-4 error would break the 1e-5 reference
    # tolerance, so the exact divide is kept.
    result = jnp.clip((1.0 - ssim_n / ssim_d) * 0.5, 0.0, 1.0)
    o_ref[...] = result.astype(o_ref.dtype)


def _choose_planes_per_step(nc, hp, wp, h, w, h_out, w_out, itemsize):
    """Largest divisor of nc whose estimated VMEM footprint fits the budget."""
    # ~12 live f32 temporaries per padded element + double-buffered I/O blocks.
    per_plane = (hp * wp * 4 * 12
                 + h * w * itemsize * 4          # 2 inputs x 2 buffers
                 + h_out * w_out * itemsize * 2)  # output x 2 buffers
    budget = 16 * 1024 * 1024
    cap = max(1, min(64, budget // max(per_plane, 1)))
    for d in range(min(nc, cap), 0, -1):
        if nc % d == 0:
            return d
    return 1


def ssim_pallas(x, y, patch_size):
    """SSIM loss map, semantics identical to the PyTorch SSIM module.

    x, y: (N, C, H, W) float arrays. Returns (N, C, Ho, Wo) where
    Ho = H + 2*(patch_size//2) - patch_size + 1 (== H for odd patch_size).
    """
    assert x.shape == y.shape and x.ndim == 4
    n, c, h, w = x.shape
    pad = patch_size // 2
    assert h > pad and w > pad, "ReflectionPad2d requires dim > pad"

    hp, wp = h + 2 * pad, w + 2 * pad
    h_out = hp - patch_size + 1
    w_out = wp - patch_size + 1
    nc = n * c

    xf = x.reshape(nc, h, w)
    yf = y.reshape(nc, h, w)

    b = _choose_planes_per_step(nc, hp, wp, h, w, h_out, w_out,
                                jnp.dtype(x.dtype).itemsize)

    kernel = functools.partial(
        _ssim_kernel, patch_size=patch_size, pad=pad,
        h=h, w=w, h_out=h_out, w_out=w_out)

    out = pl.pallas_call(
        kernel,
        out_shape=jax.ShapeDtypeStruct((nc, h_out, w_out), x.dtype),
        grid=(nc // b,),
        in_specs=[
            pl.BlockSpec((b, h, w), lambda i: (i, 0, 0)),
            pl.BlockSpec((b, h, w), lambda i: (i, 0, 0)),
        ],
        out_specs=pl.BlockSpec((b, h_out, w_out), lambda i: (i, 0, 0)),
        compiler_params=pltpu.CompilerParams(
            dimension_semantics=("parallel",),
            vmem_limit_bytes=48 * 1024 * 1024,
        ),
    )(xf, yf)

    return out.reshape(n, c, h_out, w_out)


def _ssim_reference(x, y, patch_size):
    """Pure-JAX reference (AvgPool2d stride 1 via reduce_window)."""
    pad = patch_size // 2
    xp = jnp.pad(x, ((0, 0), (0, 0), (pad, pad), (pad, pad)), mode="reflect")
    yp = jnp.pad(y, ((0, 0), (0, 0), (pad, pad), (pad, pad)), mode="reflect")

    def avg_pool(z):
        s = jax.lax.reduce_window(
            z, 0.0, jax.lax.add,
            window_dimensions=(1, 1, patch_size, patch_size),
            window_strides=(1, 1, 1, 1),
            padding="VALID",
        )
        return s / (patch_size * patch_size)

    mu_x = avg_pool(xp)
    mu_y = avg_pool(yp)
    sigma_x = avg_pool(xp * xp) - mu_x ** 2
    sigma_y = avg_pool(yp * yp) - mu_y ** 2
    sigma_xy = avg_pool(xp * yp) - mu_x * mu_y
    ssim_n = (2 * mu_x * mu_y + _C1) * (2 * sigma_xy + _C2)
    ssim_d = (mu_x ** 2 + mu_y ** 2 + _C1) * (sigma_x + sigma_y + _C2)
    return jnp.clip((1 - ssim_n / ssim_d) / 2, 0.0, 1.0)


if __name__ == "__main__":
    patch_size = 3  # typical SSIM(3) usage

    key = jax.random.PRNGKey(0)
    kx, ky = jax.random.split(key)
    x = jax.random.uniform(kx, (2, 4, 16, 16), dtype=jnp.float32)
    y = jax.random.uniform(ky, (2, 4, 16, 16), dtype=jnp.float32)

    out = ssim_pallas(x, y, patch_size)
    out = jax.block_until_ready(out)

    ref = jax.block_until_ready(_ssim_reference(x, y, patch_size))
    assert out.shape == ref.shape
    assert jnp.allclose(out, ref, atol=1e-5, rtol=1e-5), "mismatch vs JAX reference"

    print("KERNEL_OK")
</pallas_src>

<mosaic_0001>
module attributes {stable_mosaic.version = 11 : i64} {
  func.func @_ssim_kernel(%arg0: i32, %arg1: memref<8x16x16xf32, #tpu.memory_space<vmem>>, %arg2: memref<8x16x16xf32, #tpu.memory_space<vmem>>, %arg3: memref<8x16x16xf32, #tpu.memory_space<vmem>>) attributes {dimension_semantics = [#tpu.dimension_semantics<parallel>], iteration_bounds = array<i64: 1>, scalar_prefetch = 0 : i64, scratch_operands = 0 : i64, tpu.core_type = #tpu.core_type<tc>, window_params = [{transform_indices = @transform_0, window_bounds = array<i64: 8, 16, 16>}, {transform_indices = @transform_1, window_bounds = array<i64: 8, 16, 16>}, {transform_indices = @transform_2, window_bounds = array<i64: 8, 16, 16>}]} {
    %c0 = arith.constant 0 : index
    %c0_0 = arith.constant 0 : index
    %c0_1 = arith.constant 0 : index
    %0 = vector.load %arg1[%c0, %c0_0, %c0_1] : memref<8x16x16xf32, #tpu.memory_space<vmem>>, vector<8x16x16xf32>
    %c0_2 = arith.constant 0 : index
    %c0_3 = arith.constant 0 : index
    %c0_4 = arith.constant 0 : index
    %1 = vector.load %arg2[%c0_2, %c0_3, %c0_4] : memref<8x16x16xf32, #tpu.memory_space<vmem>>, vector<8x16x16xf32>
    %2 = vector.extract_strided_slice %0 {offsets = [0, 1, 0], sizes = [8, 1, 16], strides = [1, 1, 1]} : vector<8x16x16xf32> to vector<8x1x16xf32>
    %3 = vector.extract_strided_slice %0 {offsets = [0, 14, 0], sizes = [8, 1, 16], strides = [1, 1, 1]} : vector<8x16x16xf32> to vector<8x1x16xf32>
    %4 = tpu.concatenate %2, %0, %3 in 1 : vector<8x1x16xf32>, vector<8x16x16xf32>, vector<8x1x16xf32> -> vector<8x18x16xf32>
    %5 = vector.extract_strided_slice %4 {offsets = [0, 0, 1], sizes = [8, 18, 1], strides = [1, 1, 1]} : vector<8x18x16xf32> to vector<8x18x1xf32>
    %6 = vector.extract_strided_slice %4 {offsets = [0, 0, 14], sizes = [8, 18, 1], strides = [1, 1, 1]} : vector<8x18x16xf32> to vector<8x18x1xf32>
    %7 = tpu.concatenate %5, %4, %6 in 2 : vector<8x18x1xf32>, vector<8x18x16xf32>, vector<8x18x1xf32> -> vector<8x18x18xf32>
    %8 = vector.extract_strided_slice %1 {offsets = [0, 1, 0], sizes = [8, 1, 16], strides = [1, 1, 1]} : vector<8x16x16xf32> to vector<8x1x16xf32>
    %9 = vector.extract_strided_slice %1 {offsets = [0, 14, 0], sizes = [8, 1, 16], strides = [1, 1, 1]} : vector<8x16x16xf32> to vector<8x1x16xf32>
    %10 = tpu.concatenate %8, %1, %9 in 1 : vector<8x1x16xf32>, vector<8x16x16xf32>, vector<8x1x16xf32> -> vector<8x18x16xf32>
    %11 = vector.extract_strided_slice %10 {offsets = [0, 0, 1], sizes = [8, 18, 1], strides = [1, 1, 1]} : vector<8x18x16xf32> to vector<8x18x1xf32>
    %12 = vector.extract_strided_slice %10 {offsets = [0, 0, 14], sizes = [8, 18, 1], strides = [1, 1, 1]} : vector<8x18x16xf32> to vector<8x18x1xf32>
    %13 = tpu.concatenate %11, %10, %12 in 2 : vector<8x18x1xf32>, vector<8x18x16xf32>, vector<8x18x1xf32> -> vector<8x18x18xf32>
    %14 = vector.extract_strided_slice %7 {offsets = [0, 0, 0], sizes = [8, 16, 18], strides = [1, 1, 1]} : vector<8x18x18xf32> to vector<8x16x18xf32>
    %15 = vector.extract_strided_slice %7 {offsets = [0, 1, 0], sizes = [8, 16, 18], strides = [1, 1, 1]} : vector<8x18x18xf32> to vector<8x16x18xf32>
    %16 = arith.addf %14, %15 : vector<8x16x18xf32>
    %17 = vector.extract_strided_slice %7 {offsets = [0, 2, 0], sizes = [8, 16, 18], strides = [1, 1, 1]} : vector<8x18x18xf32> to vector<8x16x18xf32>
    %18 = arith.addf %16, %17 : vector<8x16x18xf32>
    %19 = vector.extract_strided_slice %18 {offsets = [0, 0, 0], sizes = [8, 16, 16], strides = [1, 1, 1]} : vector<8x16x18xf32> to vector<8x16x16xf32>
    %20 = vector.extract_strided_slice %18 {offsets = [0, 0, 1], sizes = [8, 16, 16], strides = [1, 1, 1]} : vector<8x16x18xf32> to vector<8x16x16xf32>
    %21 = arith.addf %19, %20 : vector<8x16x16xf32>
    %22 = vector.extract_strided_slice %18 {offsets = [0, 0, 2], sizes = [8, 16, 16], strides = [1, 1, 1]} : vector<8x16x18xf32> to vector<8x16x16xf32>
    %23 = arith.addf %21, %22 : vector<8x16x16xf32>
    %cst = arith.constant 0.111111112 : f32
    %24 = vector.broadcast %cst : f32 to vector<8x16x16xf32>
    %25 = arith.mulf %23, %24 : vector<8x16x16xf32>
    %26 = vector.extract_strided_slice %13 {offsets = [0, 0, 0], sizes = [8, 16, 18], strides = [1, 1, 1]} : vector<8x18x18xf32> to vector<8x16x18xf32>
    %27 = vector.extract_strided_slice %13 {offsets = [0, 1, 0], sizes = [8, 16, 18], strides = [1, 1, 1]} : vector<8x18x18xf32> to vector<8x16x18xf32>
    %28 = arith.addf %26, %27 : vector<8x16x18xf32>
    %29 = vector.extract_strided_slice %13 {offsets = [0, 2, 0], sizes = [8, 16, 18], strides = [1, 1, 1]} : vector<8x18x18xf32> to vector<8x16x18xf32>
    %30 = arith.addf %28, %29 : vector<8x16x18xf32>
    %31 = vector.extract_strided_slice %30 {offsets = [0, 0, 0], sizes = [8, 16, 16], strides = [1, 1, 1]} : vector<8x16x18xf32> to vector<8x16x16xf32>
    %32 = vector.extract_strided_slice %30 {offsets = [0, 0, 1], sizes = [8, 16, 16], strides = [1, 1, 1]} : vector<8x16x18xf32> to vector<8x16x16xf32>
    %33 = arith.addf %31, %32 : vector<8x16x16xf32>
    %34 = vector.extract_strided_slice %30 {offsets = [0, 0, 2], sizes = [8, 16, 16], strides = [1, 1, 1]} : vector<8x16x18xf32> to vector<8x16x16xf32>
    %35 = arith.addf %33, %34 : vector<8x16x16xf32>
    %cst_5 = arith.constant 0.111111112 : f32
    %36 = vector.broadcast %cst_5 : f32 to vector<8x16x16xf32>
    %37 = arith.mulf %35, %36 : vector<8x16x16xf32>
    %38 = arith.mulf %7, %7 : vector<8x18x18xf32>
    %39 = vector.extract_strided_slice %38 {offsets = [0, 0, 0], sizes = [8, 16, 18], strides = [1, 1, 1]} : vector<8x18x18xf32> to vector<8x16x18xf32>
    %40 = vector.extract_strided_slice %38 {offsets = [0, 1, 0], sizes = [8, 16, 18], strides = [1, 1, 1]} : vector<8x18x18xf32> to vector<8x16x18xf32>
    %41 = arith.addf %39, %40 : vector<8x16x18xf32>
    %42 = vector.extract_strided_slice %38 {offsets = [0, 2, 0], sizes = [8, 16, 18], strides = [1, 1, 1]} : vector<8x18x18xf32> to vector<8x16x18xf32>
    %43 = arith.addf %41, %42 : vector<8x16x18xf32>
    %44 = vector.extract_strided_slice %43 {offsets = [0, 0, 0], sizes = [8, 16, 16], strides = [1, 1, 1]} : vector<8x16x18xf32> to vector<8x16x16xf32>
    %45 = vector.extract_strided_slice %43 {offsets = [0, 0, 1], sizes = [8, 16, 16], strides = [1, 1, 1]} : vector<8x16x18xf32> to vector<8x16x16xf32>
    %46 = arith.addf %44, %45 : vector<8x16x16xf32>
    %47 = vector.extract_strided_slice %43 {offsets = [0, 0, 2], sizes = [8, 16, 16], strides = [1, 1, 1]} : vector<8x16x18xf32> to vector<8x16x16xf32>
    %48 = arith.addf %46, %47 : vector<8x16x16xf32>
    %cst_6 = arith.constant 0.111111112 : f32
    %49 = vector.broadcast %cst_6 : f32 to vector<8x16x16xf32>
    %50 = arith.mulf %48, %49 : vector<8x16x16xf32>
    %51 = arith.mulf %25, %25 : vector<8x16x16xf32>
    %52 = arith.subf %50, %51 : vector<8x16x16xf32>
    %53 = arith.mulf %13, %13 : vector<8x18x18xf32>
    %54 = vector.extract_strided_slice %53 {offsets = [0, 0, 0], sizes = [8, 16, 18], strides = [1, 1, 1]} : vector<8x18x18xf32> to vector<8x16x18xf32>
    %55 = vector.extract_strided_slice %53 {offsets = [0, 1, 0], sizes = [8, 16, 18], strides = [1, 1, 1]} : vector<8x18x18xf32> to vector<8x16x18xf32>
    %56 = arith.addf %54, %55 : vector<8x16x18xf32>
    %57 = vector.extract_strided_slice %53 {offsets = [0, 2, 0], sizes = [8, 16, 18], strides = [1, 1, 1]} : vector<8x18x18xf32> to vector<8x16x18xf32>
    %58 = arith.addf %56, %57 : vector<8x16x18xf32>
    %59 = vector.extract_strided_slice %58 {offsets = [0, 0, 0], sizes = [8, 16, 16], strides = [1, 1, 1]} : vector<8x16x18xf32> to vector<8x16x16xf32>
    %60 = vector.extract_strided_slice %58 {offsets = [0, 0, 1], sizes = [8, 16, 16], strides = [1, 1, 1]} : vector<8x16x18xf32> to vector<8x16x16xf32>
    %61 = arith.addf %59, %60 : vector<8x16x16xf32>
    %62 = vector.extract_strided_slice %58 {offsets = [0, 0, 2], sizes = [8, 16, 16], strides = [1, 1, 1]} : vector<8x16x18xf32> to vector<8x16x16xf32>
    %63 = arith.addf %61, %62 : vector<8x16x16xf32>
    %cst_7 = arith.constant 0.111111112 : f32
    %64 = vector.broadcast %cst_7 : f32 to vector<8x16x16xf32>
    %65 = arith.mulf %63, %64 : vector<8x16x16xf32>
    %66 = arith.mulf %37, %37 : vector<8x16x16xf32>
    %67 = arith.subf %65, %66 : vector<8x16x16xf32>
    %68 = arith.mulf %7, %13 : vector<8x18x18xf32>
    %69 = vector.extract_strided_slice %68 {offsets = [0, 0, 0], sizes = [8, 16, 18], strides = [1, 1, 1]} : vector<8x18x18xf32> to vector<8x16x18xf32>
    %70 = vector.extract_strided_slice %68 {offsets = [0, 1, 0], sizes = [8, 16, 18], strides = [1, 1, 1]} : vector<8x18x18xf32> to vector<8x16x18xf32>
    %71 = arith.addf %69, %70 : vector<8x16x18xf32>
    %72 = vector.extract_strided_slice %68 {offsets = [0, 2, 0], sizes = [8, 16, 18], strides = [1, 1, 1]} : vector<8x18x18xf32> to vector<8x16x18xf32>
    %73 = arith.addf %71, %72 : vector<8x16x18xf32>
    %74 = vector.extract_strided_slice %73 {offsets = [0, 0, 0], sizes = [8, 16, 16], strides = [1, 1, 1]} : vector<8x16x18xf32> to vector<8x16x16xf32>
    %75 = vector.extract_strided_slice %73 {offsets = [0, 0, 1], sizes = [8, 16, 16], strides = [1, 1, 1]} : vector<8x16x18xf32> to vector<8x16x16xf32>
    %76 = arith.addf %74, %75 : vector<8x16x16xf32>
    %77 = vector.extract_strided_slice %73 {offsets = [0, 0, 2], sizes = [8, 16, 16], strides = [1, 1, 1]} : vector<8x16x18xf32> to vector<8x16x16xf32>
    %78 = arith.addf %76, %77 : vector<8x16x16xf32>
    %cst_8 = arith.constant 0.111111112 : f32
    %79 = vector.broadcast %cst_8 : f32 to vector<8x16x16xf32>
    %80 = arith.mulf %78, %79 : vector<8x16x16xf32>
    %81 = arith.mulf %25, %37 : vector<8x16x16xf32>
    %82 = arith.subf %80, %81 : vector<8x16x16xf32>
    %cst_9 = arith.constant 2.000000e+00 : f32
    %83 = vector.broadcast %cst_9 : f32 to vector<8x16x16xf32>
    %84 = arith.mulf %83, %25 : vector<8x16x16xf32>
    %85 = arith.mulf %84, %37 : vector<8x16x16xf32>
    %cst_10 = arith.constant 9.99999974E-5 : f32
    %86 = vector.broadcast %cst_10 : f32 to vector<8x16x16xf32>
    %87 = arith.addf %85, %86 : vector<8x16x16xf32>
    %cst_11 = arith.constant 2.000000e+00 : f32
    %88 = vector.broadcast %cst_11 : f32 to vector<8x16x16xf32>
    %89 = arith.mulf %88, %82 : vector<8x16x16xf32>
    %cst_12 = arith.constant 8.99999984E-4 : f32
    %90 = vector.broadcast %cst_12 : f32 to vector<8x16x16xf32>
    %91 = arith.addf %89, %90 : vector<8x16x16xf32>
    %92 = arith.mulf %87, %91 : vector<8x16x16xf32>
    %93 = arith.mulf %25, %25 : vector<8x16x16xf32>
    %94 = arith.mulf %37, %37 : vector<8x16x16xf32>
    %95 = arith.addf %93, %94 : vector<8x16x16xf32>
    %cst_13 = arith.constant 9.99999974E-5 : f32
    %96 = vector.broadcast %cst_13 : f32 to vector<8x16x16xf32>
    %97 = arith.addf %95, %96 : vector<8x16x16xf32>
    %98 = arith.addf %52, %67 : vector<8x16x16xf32>
    %cst_14 = arith.constant 8.99999984E-4 : f32
    %99 = vector.broadcast %cst_14 : f32 to vector<8x16x16xf32>
    %100 = arith.addf %98, %99 : vector<8x16x16xf32>
    %101 = arith.mulf %97, %100 : vector<8x16x16xf32>
    %102 = arith.divf %92, %101 : vector<8x16x16xf32>
    %cst_15 = arith.constant 1.000000e+00 : f32
    %103 = vector.broadcast %cst_15 : f32 to vector<8x16x16xf32>
    %104 = arith.subf %103, %102 : vector<8x16x16xf32>
    %cst_16 = arith.constant 5.000000e-01 : f32
    %105 = vector.broadcast %cst_16 : f32 to vector<8x16x16xf32>
    %106 = arith.mulf %104, %105 : vector<8x16x16xf32>
    %cst_17 = arith.constant 0.000000e+00 : f32
    %cst_18 = arith.constant 1.000000e+00 : f32
    %107 = vector.broadcast %cst_17 : f32 to vector<8x16x16xf32>
    %108 = arith.maximumf %107, %106 : vector<8x16x16xf32>
    %109 = vector.broadcast %cst_18 : f32 to vector<8x16x16xf32>
    %110 = arith.minimumf %109, %108 : vector<8x16x16xf32>
    %c0_19 = arith.constant 0 : index
    %c0_20 = arith.constant 0 : index
    %c0_21 = arith.constant 0 : index
    %111 = vector.load %arg3[%c0_19, %c0_20, %c0_21] : memref<8x16x16xf32, #tpu.memory_space<vmem>>, vector<8x16x16xf32>
    tpu.vector_store %arg3[%c0_19, %c0_20, %c0_21], %110 {strides = array<i32>} : memref<8x16x16xf32, #tpu.memory_space<vmem>>, vector<8x16x16xf32>,
    return
  }
  func.func @transform_0(%arg0: i32) -> (i32, i32, i32) {
    %c0_i32 = arith.constant 0 : i32
    %c0_i32_0 = arith.constant 0 : i32
    %c0_i32_1 = arith.constant 0 : i32
    return %arg0, %c0_i32, %c0_i32_0 : i32, i32, i32
  }
  func.func @transform_1(%arg0: i32) -> (i32, i32, i32) {
    %c0_i32 = arith.constant 0 : i32
    %c0_i32_0 = arith.constant 0 : i32
    %c0_i32_1 = arith.constant 0 : i32
    return %arg0, %c0_i32, %c0_i32_0 : i32, i32, i32
  }
  func.func @transform_2(%arg0: i32) -> (i32, i32, i32) {
    %c0_i32 = arith.constant 0 : i32
    %c0_i32_0 = arith.constant 0 : i32
    %c0_i32_1 = arith.constant 0 : i32
    return %arg0, %c0_i32, %c0_i32_0 : i32, i32, i32
  }
}

</mosaic_0001>

<llo_original>
// kernel: tpu_custom_call.1
$region0: #{tpu_custom_call.1}
  #allocation0 [shape = 'u32[]', space=smem, size = 0x4, offset = 0x4, fixed_abs, tag = 'smem constant byte address 0x4 - core index']
  #allocation1 [shape = 'u32[72,128]{1,0:T(1,128)}', space=vmem, size = 0x9000, scoped, tag = 'internal scratch']
  %s0 = inlined_call_operand.hbm [shape: f32[8,16,16], index: 0, kind: input, shape index: {}]
  %s1 = inlined_call_operand.hbm [shape: f32[8,16,16], index: 1, kind: input, shape index: {}]
  %s2 = inlined_call_operand.hbm [shape: f32[8,16,16], index: 2, kind: output, shape index: {}]
  %s3 = sld [smem:[#allocation0]]
  $region26: #{tpu_custom_call.1} parent=0
    _
  %s5 = ssub.s32 1, %s3
  %s6 = scalar_select 0, %s5, %s3
  $region1: #{tpu_custom_call.1} parent=0
    #allocation2 [shape = 'u8[65536]{0}', space=vmem, size = 0x10000, scoped, tag = 'input window, operand 0, single buffered']
    #allocation3 [shape = 's32[1]{0}', space=sflag, size = 0x4, scoped, tag = 'scoped memory for tpu_custom_call.1']
    #allocation4 [shape = 's32[1]{0}', space=sflag, size = 0x4, scoped, tag = 'scoped memory for tpu_custom_call.1']
    #allocation5 [shape = 'u8[65536]{0}', space=vmem, size = 0x10000, scoped, tag = 'input window, operand 1, single buffered']
    #allocation6 [shape = 's32[1]{0}', space=sflag, size = 0x4, scoped, tag = 'scoped memory for tpu_custom_call.1']
    #allocation7 [shape = 'u8[65536]{0}', space=vmem, size = 0x10000, scoped, tag = 'output window, operand 0, single buffered']
    %7 = vsyncpa [#allocation3], 0
    %8 = vsyncpa [#allocation6], 0
    %9 = vsyncpa [#allocation4], 0
    // Predicated region
    $region2: #{tpu_custom_call.1} parent=1 // pred_check
      _
    $region3: #{tpu_custom_call.1} parent=1 // pred_check_branch
      %11 = sbr.rel (0) target = $region5
    $region4: #{tpu_custom_call.1} parent=1 // pred_region
      %13 = vsyncadd [#allocation3], 0
      %s14 = sshll.u32 %s0, 4
      %s15 = int_to_ptr.hbm [resolvable:$true] %s14
      %s16 = sshll.u32 [#allocation2], 4
      %s17 = int_to_ptr.vmem [resolvable:$true] %s16
      %22 = dma.hbm_to_vmem [thread:$0]  %s15, 2048, %s17, [#allocation3], 128, 128, 8
    $region5: #{tpu_custom_call.1} parent=1 // pred_fallthru
      _
    // Predicated region
    $region6: #{tpu_custom_call.1} parent=1 // pred_check
      _
    $region7: #{tpu_custom_call.1} parent=1 // pred_check_branch
      %24 = sbr.rel (0) target = $region9
    $region8: #{tpu_custom_call.1} parent=1 // pred_region
      %26 = vsyncadd [#allocation6], 0
      %s27 = sshll.u32 %s1, 4
      %s28 = int_to_ptr.hbm [resolvable:$true] %s27
      %s29 = sshll.u32 [#allocation5], 4
      %s30 = int_to_ptr.vmem [resolvable:$true] %s29
      %35 = dma.hbm_to_vmem [thread:$0]  %s28, 2048, %s30, [#allocation6], 128, 128, 8
    $region9: #{tpu_custom_call.1} parent=1 // pred_fallthru
      _
    // Predicated region
    $region10: #{tpu_custom_call.1} parent=1 // pred_check
      _
    $region11: #{tpu_custom_call.1} parent=1 // pred_check_branch
      %37 = sbr.rel (0) target = $region13
    $region12: #{tpu_custom_call.1} parent=1 // pred_region
      %39 = dma.done [#allocation3], 2048
    $region13: #{tpu_custom_call.1} parent=1 // pred_fallthru
      _
    // Predicated region
    $region14: #{tpu_custom_call.1} parent=1 // pred_check
      _
    $region15: #{tpu_custom_call.1} parent=1 // pred_check_branch
      %41 = sbr.rel (0) target = $region17
    $region16: #{tpu_custom_call.1} parent=1 // pred_region
      %43 = dma.done [#allocation6], 2048
    $region17: #{tpu_custom_call.1} parent=1 // pred_fallthru
      _
    %v44 = vld [vmem:[#allocation2] sm:$0xff]
    %v45 = vld [vmem:[#allocation2 + $0x8] sm:$0xff]
    %v46 = vld [vmem:[#allocation2 + $0x10] sm:$0xff]
    %v47 = vld [vmem:[#allocation2 + $0x18] sm:$0xff]
    %v48 = vld [vmem:[#allocation2 + $0x20] sm:$0xff]
    %v49 = vld [vmem:[#allocation2 + $0x28] sm:$0xff]
    %v50 = vld [vmem:[#allocation2 + $0x30] sm:$0xff]
    %v51 = vld [vmem:[#allocation2 + $0x38] sm:$0xff]
    %v52 = vld [vmem:[#allocation2 + $0x40] sm:$0xff]
    %v53 = vld [vmem:[#allocation2 + $0x48] sm:$0xff]
    %v54 = vld [vmem:[#allocation2 + $0x50] sm:$0xff]
    %v55 = vld [vmem:[#allocation2 + $0x58] sm:$0xff]
    %v56 = vld [vmem:[#allocation2 + $0x60] sm:$0xff]
    %v57 = vld [vmem:[#allocation2 + $0x68] sm:$0xff]
    %v58 = vld [vmem:[#allocation2 + $0x70] sm:$0xff]
    %v59 = vld [vmem:[#allocation2 + $0x78] sm:$0xff]
    %v60 = vld [vmem:[#allocation5] sm:$0xff]
    %v61 = vld [vmem:[#allocation5 + $0x8] sm:$0xff]
    %v62 = vld [vmem:[#allocation5 + $0x10] sm:$0xff]
    %v63 = vld [vmem:[#allocation5 + $0x18] sm:$0xff]
    %v64 = vld [vmem:[#allocation5 + $0x20] sm:$0xff]
    %v65 = vld [vmem:[#allocation5 + $0x28] sm:$0xff]
    %v66 = vld [vmem:[#allocation5 + $0x30] sm:$0xff]
    %v67 = vld [vmem:[#allocation5 + $0x38] sm:$0xff]
    %v68 = vld [vmem:[#allocation5 + $0x40] sm:$0xff]
    %v69 = vld [vmem:[#allocation5 + $0x48] sm:$0xff]
    %v70 = vld [vmem:[#allocation5 + $0x50] sm:$0xff]
    %v71 = vld [vmem:[#allocation5 + $0x58] sm:$0xff]
    %v72 = vld [vmem:[#allocation5 + $0x60] sm:$0xff]
    %v73 = vld [vmem:[#allocation5 + $0x68] sm:$0xff]
    %v74 = vld [vmem:[#allocation5 + $0x70] sm:$0xff]
    %v75 = vld [vmem:[#allocation5 + $0x78] sm:$0xff]
    %v84 = vrot.slane %v44, 1
    %v85 = vrot.slane %v46, 1
    %v86 = vrot.slane %v48, 1
    %v87 = vrot.slane %v50, 1
    %v88 = vrot.slane %v52, 1
    %v89 = vrot.slane %v54, 1
    %v90 = vrot.slane %v56, 1
    %v91 = vrot.slane %v58, 1
    %vm108 = vcmask 1040384
    %v109 = vrot.slane %v44, 7
    %v110 = vrot.slane %v45, 7
    %v111 = vsel %vm108, %v109, %v110
    %v112 = vrot.slane %v46, 7
    %v113 = vrot.slane %v47, 7
    %v114 = vsel %vm108, %v112, %v113
    %v115 = vrot.slane %v48, 7
    %v116 = vrot.slane %v49, 7
    %v117 = vsel %vm108, %v115, %v116
    %v118 = vrot.slane %v50, 7
    %v119 = vrot.slane %v51, 7
    %v120 = vsel %vm108, %v118, %v119
    %v121 = vrot.slane %v52, 7
    %v122 = vrot.slane %v53, 7
    %v123 = vsel %vm108, %v121, %v122
    %v124 = vrot.slane %v54, 7
    %v125 = vrot.slane %v55, 7
    %v126 = vsel %vm108, %v124, %v125
    %v127 = vrot.slane %v56, 7
    %v128 = vrot.slane %v57, 7
    %v129 = vsel %vm108, %v127, %v128
    %v130 = vrot.slane %v58, 7
    %v131 = vrot.slane %v59, 7
    %v132 = vsel %vm108, %v130, %v131
    %v149 = vrot.slane %v45, 5
    %v150 = vrot.slane %v47, 5
    %v151 = vrot.slane %v49, 5
    %v152 = vrot.slane %v51, 5
    %v153 = vrot.slane %v53, 5
    %v154 = vrot.slane %v55, 5
    %v155 = vrot.slane %v57, 5
    %v156 = vrot.slane %v59, 5
    %v165 = vsel %vm108, %v84, %v109
    %v166 = vsel %vm108, %v85, %v112
    %v167 = vsel %vm108, %v86, %v115
    %v168 = vsel %vm108, %v87, %v118
    %v169 = vsel %vm108, %v88, %v121
    %v170 = vsel %vm108, %v89, %v124
    %v171 = vsel %vm108, %v90, %v127
    %v172 = vsel %vm108, %v91, %v130
    %v173 = vsel %vm108, %v110, %v149
    %v174 = vsel %vm108, %v113, %v150
    %v175 = vsel %vm108, %v116, %v151
    %v176 = vsel %vm108, %v119, %v152
    %v177 = vsel %vm108, %v122, %v153
    %v178 = vsel %vm108, %v125, %v154
    %v179 = vsel %vm108, %v128, %v155
    %v180 = vsel %vm108, %v131, %v156
    %197 = vrot.lane.b32.xlu0 %v165, 127
    %v198 = vpop.permute.xlu0 %197
    %199 = vrot.lane.b32.xlu0 %v111, 127
    %v200 = vpop.permute.xlu0 %199
    %201 = vrot.lane.b32.xlu0 %v173, 127
    %v202 = vpop.permute.xlu0 %201
    %203 = vrot.lane.b32.xlu0 %v166, 127
    %v204 = vpop.permute.xlu0 %203
    %205 = vrot.lane.b32.xlu0 %v114, 127
    %v206 = vpop.permute.xlu0 %205
    %207 = vrot.lane.b32.xlu0 %v174, 127
    %v208 = vpop.permute.xlu0 %207
    %209 = vrot.lane.b32.xlu0 %v167, 127
    %v210 = vpop.permute.xlu0 %209
    %211 = vrot.lane.b32.xlu0 %v117, 127
    %v212 = vpop.permute.xlu0 %211
    %213 = vrot.lane.b32.xlu0 %v175, 127
    %v214 = vpop.permute.xlu0 %213
    %215 = vrot.lane.b32.xlu0 %v168, 127
    %v216 = vpop.permute.xlu0 %215
    %217 = vrot.lane.b32.xlu0 %v120, 127
    %v218 = vpop.permute.xlu0 %217
    %219 = vrot.lane.b32.xlu0 %v176, 127
    %v220 = vpop.permute.xlu0 %219
    %221 = vrot.lane.b32.xlu0 %v169, 127
    %v222 = vpop.permute.xlu0 %221
    %223 = vrot.lane.b32.xlu0 %v123, 127
    %v224 = vpop.permute.xlu0 %223
    %225 = vrot.lane.b32.xlu0 %v177, 127
    %v226 = vpop.permute.xlu0 %225
    %227 = vrot.lane.b32.xlu0 %v170, 127
    %v228 = vpop.permute.xlu0 %227
    %229 = vrot.lane.b32.xlu0 %v126, 127
    %v230 = vpop.permute.xlu0 %229
    %231 = vrot.lane.b32.xlu0 %v178, 127
    %v232 = vpop.permute.xlu0 %231
    %233 = vrot.lane.b32.xlu0 %v171, 127
    %v234 = vpop.permute.xlu0 %233
    %235 = vrot.lane.b32.xlu0 %v129, 127
    %v236 = vpop.permute.xlu0 %235
    %237 = vrot.lane.b32.xlu0 %v179, 127
    %v238 = vpop.permute.xlu0 %237
    %239 = vrot.lane.b32.xlu0 %v172, 127
    %v240 = vpop.permute.xlu0 %239
    %241 = vrot.lane.b32.xlu0 %v132, 127
    %v242 = vpop.permute.xlu0 %241
    %243 = vrot.lane.b32.xlu0 %v180, 127
    %v244 = vpop.permute.xlu0 %243
    %269 = vrot.lane.b32.xlu0 %v165, 1
    %v270 = vpop.permute.xlu0 %269
    %271 = vrot.lane.b32.xlu0 %v111, 1
    %v272 = vpop.permute.xlu0 %271
    %273 = vrot.lane.b32.xlu0 %v173, 1
    %v274 = vpop.permute.xlu0 %273
    %275 = vrot.lane.b32.xlu0 %v166, 1
    %v276 = vpop.permute.xlu0 %275
    %277 = vrot.lane.b32.xlu0 %v114, 1
    %v278 = vpop.permute.xlu0 %277
    %279 = vrot.lane.b32.xlu0 %v174, 1
    %v280 = vpop.permute.xlu0 %279
    %281 = vrot.lane.b32.xlu0 %v167, 1
    %v282 = vpop.permute.xlu0 %281
    %283 = vrot.lane.b32.xlu0 %v117, 1
    %v284 = vpop.permute.xlu0 %283
    %285 = vrot.lane.b32.xlu0 %v175, 1
    %v286 = vpop.permute.xlu0 %285
    %287 = vrot.lane.b32.xlu0 %v168, 1
    %v288 = vpop.permute.xlu0 %287
    %289 = vrot.lane.b32.xlu0 %v120, 1
    %v290 = vpop.permute.xlu0 %289
    %291 = vrot.lane.b32.xlu0 %v176, 1
    %v292 = vpop.permute.xlu0 %291
    %293 = vrot.lane.b32.xlu0 %v169, 1
    %v294 = vpop.permute.xlu0 %293
    %295 = vrot.lane.b32.xlu0 %v123, 1
    %v296 = vpop.permute.xlu0 %295
    %297 = vrot.lane.b32.xlu0 %v177, 1
    %v298 = vpop.permute.xlu0 %297
    %299 = vrot.lane.b32.xlu0 %v170, 1
    %v300 = vpop.permute.xlu0 %299
    %301 = vrot.lane.b32.xlu0 %v126, 1
    %v302 = vpop.permute.xlu0 %301
    %303 = vrot.lane.b32.xlu0 %v178, 1
    %v304 = vpop.permute.xlu0 %303
    %305 = vrot.lane.b32.xlu0 %v171, 1
    %v306 = vpop.permute.xlu0 %305
    %307 = vrot.lane.b32.xlu0 %v129, 1
    %v308 = vpop.permute.xlu0 %307
    %309 = vrot.lane.b32.xlu0 %v179, 1
    %v310 = vpop.permute.xlu0 %309
    %311 = vrot.lane.b32.xlu0 %v172, 1
    %v312 = vpop.permute.xlu0 %311
    %313 = vrot.lane.b32.xlu0 %v132, 1
    %v314 = vpop.permute.xlu0 %313
    %315 = vrot.lane.b32.xlu0 %v180, 1
    %v316 = vpop.permute.xlu0 %315
    %341 = vrot.lane.b32.xlu0 %v165, 3
    %v342 = vpop.permute.xlu0 %341
    %343 = vrot.lane.b32.xlu0 %v111, 3
    %v344 = vpop.permute.xlu0 %343
    %345 = vrot.lane.b32.xlu0 %v173, 3
    %v346 = vpop.permute.xlu0 %345
    %347 = vrot.lane.b32.xlu0 %v166, 3
    %v348 = vpop.permute.xlu0 %347
    %349 = vrot.lane.b32.xlu0 %v114, 3
    %v350 = vpop.permute.xlu0 %349
    %351 = vrot.lane.b32.xlu0 %v174, 3
    %v352 = vpop.permute.xlu0 %351
    %353 = vrot.lane.b32.xlu0 %v167, 3
    %v354 = vpop.permute.xlu0 %353
    %355 = vrot.lane.b32.xlu0 %v117, 3
    %v356 = vpop.permute.xlu0 %355
    %357 = vrot.lane.b32.xlu0 %v175, 3
    %v358 = vpop.permute.xlu0 %357
    %359 = vrot.lane.b32.xlu0 %v168, 3
    %v360 = vpop.permute.xlu0 %359
    %361 = vrot.lane.b32.xlu0 %v120, 3
    %v362 = vpop.permute.xlu0 %361
    %363 = vrot.lane.b32.xlu0 %v176, 3
    %v364 = vpop.permute.xlu0 %363
    %365 = vrot.lane.b32.xlu0 %v169, 3
    %v366 = vpop.permute.xlu0 %365
    %367 = vrot.lane.b32.xlu0 %v123, 3
    %v368 = vpop.permute.xlu0 %367
    %369 = vrot.lane.b32.xlu0 %v177, 3
    %v370 = vpop.permute.xlu0 %369
    %371 = vrot.lane.b32.xlu0 %v170, 3
    %v372 = vpop.permute.xlu0 %371
    %373 = vrot.lane.b32.xlu0 %v126, 3
    %v374 = vpop.permute.xlu0 %373
    %375 = vrot.lane.b32.xlu0 %v178, 3
    %v376 = vpop.permute.xlu0 %375
    %377 = vrot.lane.b32.xlu0 %v171, 3
    %v378 = vpop.permute.xlu0 %377
    %379 = vrot.lane.b32.xlu0 %v129, 3
    %v380 = vpop.permute.xlu0 %379
    %381 = vrot.lane.b32.xlu0 %v179, 3
    %v382 = vpop.permute.xlu0 %381
    %383 = vrot.lane.b32.xlu0 %v172, 3
    %v384 = vpop.permute.xlu0 %383
    %385 = vrot.lane.b32.xlu0 %v132, 3
    %v386 = vpop.permute.xlu0 %385
    %387 = vrot.lane.b32.xlu0 %v180, 3
    %v388 = vpop.permute.xlu0 %387
    %vm413 = vcmask 7168
    %v414 = vsel %vm413, %v198, %v270
    %v415 = vsel %vm413, %v200, %v272
    %v416 = vsel %vm413, %v202, %v274
    %v417 = vsel %vm413, %v204, %v276
    %v418 = vsel %vm413, %v206, %v278
    %v419 = vsel %vm413, %v208, %v280
    %v420 = vsel %vm413, %v210, %v282
    %v421 = vsel %vm413, %v212, %v284
    %v422 = vsel %vm413, %v214, %v286
    %v423 = vsel %vm413, %v216, %v288
    %v424 = vsel %vm413, %v218, %v290
    %v425 = vsel %vm413, %v220, %v292
    %v426 = vsel %vm413, %v222, %v294
    %v427 = vsel %vm413, %v224, %v296
    %v428 = vsel %vm413, %v226, %v298
    %v429 = vsel %vm413, %v228, %v300
    %v430 = vsel %vm413, %v230, %v302
    %v431 = vsel %vm413, %v232, %v304
    %v432 = vsel %vm413, %v234, %v306
    %v433 = vsel %vm413, %v236, %v308
    %v434 = vsel %vm413, %v238, %v310
    %v435 = vsel %vm413, %v240, %v312
    %v436 = vsel %vm413, %v242, %v314
    %v437 = vsel %vm413, %v244, %v316
    %vm438 = vcmask 138240
    %v439 = vsel %vm438, %v414, %v342
    %v440 = vsel %vm438, %v415, %v344
    %v441 = vsel %vm438, %v416, %v346
    %v442 = vsel %vm438, %v417, %v348
    %v443 = vsel %vm438, %v418, %v350
    %v444 = vsel %vm438, %v419, %v352
    %v445 = vsel %vm438, %v420, %v354
    %v446 = vsel %vm438, %v421, %v356
    %v447 = vsel %vm438, %v422, %v358
    %v448 = vsel %vm438, %v423, %v360
    %v449 = vsel %vm438, %v424, %v362
    %v450 = vsel %vm438, %v425, %v364
    %v451 = vsel %vm438, %v426, %v366
    %v452 = vsel %vm438, %v427, %v368
    %v453 = vsel %vm438, %v428, %v370
    %v454 = vsel %vm438, %v429, %v372
    %v455 = vsel %vm438, %v430, %v374
    %v456 = vsel %vm438, %v431, %v376
    %v457 = vsel %vm438, %v432, %v378
    %v458 = vsel %vm438, %v433, %v380
    %v459 = vsel %vm438, %v434, %v382
    %v460 = vsel %vm438, %v435, %v384
    %v461 = vsel %vm438, %v436, %v386
    %v462 = vsel %vm438, %v437, %v388
    %v471 = vrot.slane %v60, 1
    %v472 = vrot.slane %v62, 1
    %v473 = vrot.slane %v64, 1
    %v474 = vrot.slane %v66, 1
    %v475 = vrot.slane %v68, 1
    %v476 = vrot.slane %v70, 1
    %v477 = vrot.slane %v72, 1
    %v478 = vrot.slane %v74, 1
    %v495 = vrot.slane %v60, 7
    %v496 = vrot.slane %v61, 7
    %v497 = vsel %vm108, %v495, %v496
    %v498 = vrot.slane %v62, 7
    %v499 = vrot.slane %v63, 7
    %v500 = vsel %vm108, %v498, %v499
    %v501 = vrot.slane %v64, 7
    %v502 = vrot.slane %v65, 7
    %v503 = vsel %vm108, %v501, %v502
    %v504 = vrot.slane %v66, 7
    %v505 = vrot.slane %v67, 7
    %v506 = vsel %vm108, %v504, %v505
    %v507 = vrot.slane %v68, 7
    %v508 = vrot.slane %v69, 7
    %v509 = vsel %vm108, %v507, %v508
    %v510 = vrot.slane %v70, 7
    %v511 = vrot.slane %v71, 7
    %v512 = vsel %vm108, %v510, %v511
    %v513 = vrot.slane %v72, 7
    %v514 = vrot.slane %v73, 7
    %v515 = vsel %vm108, %v513, %v514
    %v516 = vrot.slane %v74, 7
    %v517 = vrot.slane %v75, 7
    %v518 = vsel %vm108, %v516, %v517
    %v535 = vrot.slane %v61, 5
    %v536 = vrot.slane %v63, 5
    %v537 = vrot.slane %v65, 5
    %v538 = vrot.slane %v67, 5
    %v539 = vrot.slane %v69, 5
    %v540 = vrot.slane %v71, 5
    %v541 = vrot.slane %v73, 5
    %v542 = vrot.slane %v75, 5
    %v551 = vsel %vm108, %v471, %v495
    %v552 = vsel %vm108, %v472, %v498
    %v553 = vsel %vm108, %v473, %v501
    %v554 = vsel %vm108, %v474, %v504
    %v555 = vsel %vm108, %v475, %v507
    %v556 = vsel %vm108, %v476, %v510
    %v557 = vsel %vm108, %v477, %v513
    %v558 = vsel %vm108, %v478, %v516
    %v559 = vsel %vm108, %v496, %v535
    %v560 = vsel %vm108, %v499, %v536
    %v561 = vsel %vm108, %v502, %v537
    %v562 = vsel %vm108, %v505, %v538
    %v563 = vsel %vm108, %v508, %v539
    %v564 = vsel %vm108, %v511, %v540
    %v565 = vsel %vm108, %v514, %v541
    %v566 = vsel %vm108, %v517, %v542
    %583 = vrot.lane.b32.xlu0 %v551, 127
    %v584 = vpop.permute.xlu0 %583
    %585 = vrot.lane.b32.xlu0 %v497, 127
    %v586 = vpop.permute.xlu0 %585
    %587 = vrot.lane.b32.xlu0 %v559, 127
    %v588 = vpop.permute.xlu0 %587
    %589 = vrot.lane.b32.xlu0 %v552, 127
    %v590 = vpop.permute.xlu0 %589
    %591 = vrot.lane.b32.xlu0 %v500, 127
    %v592 = vpop.permute.xlu0 %591
    %593 = vrot.lane.b32.xlu0 %v560, 127
    %v594 = vpop.permute.xlu0 %593
    %595 = vrot.lane.b32.xlu0 %v553, 127
    %v596 = vpop.permute.xlu0 %595
    %597 = vrot.lane.b32.xlu0 %v503, 127
    %v598 = vpop.permute.xlu0 %597
    %599 = vrot.lane.b32.xlu0 %v561, 127
    %v600 = vpop.permute.xlu0 %599
    %601 = vrot.lane.b32.xlu0 %v554, 127
    %v602 = vpop.permute.xlu0 %601
    %603 = vrot.lane.b32.xlu0 %v506, 127
    %v604 = vpop.permute.xlu0 %603
    %605 = vrot.lane.b32.xlu0 %v562, 127
    %v606 = vpop.permute.xlu0 %605
    %607 = vrot.lane.b32.xlu0 %v555, 127
    %v608 = vpop.permute.xlu0 %607
    %609 = vrot.lane.b32.xlu0 %v509, 127
    %v610 = vpop.permute.xlu0 %609
    %611 = vrot.lane.b32.xlu0 %v563, 127
    %v612 = vpop.permute.xlu0 %611
    %613 = vrot.lane.b32.xlu0 %v556, 127
    %v614 = vpop.permute.xlu0 %613
    %615 = vrot.lane.b32.xlu0 %v512, 127
    %v616 = vpop.permute.xlu0 %615
    %617 = vrot.lane.b32.xlu0 %v564, 127
    %v618 = vpop.permute.xlu0 %617
    %619 = vrot.lane.b32.xlu0 %v557, 127
    %v620 = vpop.permute.xlu0 %619
    %621 = vrot.lane.b32.xlu0 %v515, 127
    %v622 = vpop.permute.xlu0 %621
    %623 = vrot.lane.b32.xlu0 %v565, 127
    %v624 = vpop.permute.xlu0 %623
    %625 = vrot.lane.b32.xlu0 %v558, 127
    %v626 = vpop.permute.xlu0 %625
    %627 = vrot.lane.b32.xlu0 %v518, 127
    %v628 = vpop.permute.xlu0 %627
    %629 = vrot.lane.b32.xlu0 %v566, 127
    %v630 = vpop.permute.xlu0 %629
    %655 = vrot.lane.b32.xlu0 %v551, 1
    %v656 = vpop.permute.xlu0 %655
    %657 = vrot.lane.b32.xlu0 %v497, 1
    %v658 = vpop.permute.xlu0 %657
    %659 = vrot.lane.b32.xlu0 %v559, 1
    %v660 = vpop.permute.xlu0 %659
    %661 = vrot.lane.b32.xlu0 %v552, 1
    %v662 = vpop.permute.xlu0 %661
    %663 = vrot.lane.b32.xlu0 %v500, 1
    %v664 = vpop.permute.xlu0 %663
    %665 = vrot.lane.b32.xlu0 %v560, 1
    %v666 = vpop.permute.xlu0 %665
    %667 = vrot.lane.b32.xlu0 %v553, 1
    %v668 = vpop.permute.xlu0 %667
    %669 = vrot.lane.b32.xlu0 %v503, 1
    %v670 = vpop.permute.xlu0 %669
    %671 = vrot.lane.b32.xlu0 %v561, 1
    %v672 = vpop.permute.xlu0 %671
    %673 = vrot.lane.b32.xlu0 %v554, 1
    %v674 = vpop.permute.xlu0 %673
    %675 = vrot.lane.b32.xlu0 %v506, 1
    %v676 = vpop.permute.xlu0 %675
    %677 = vrot.lane.b32.xlu0 %v562, 1
    %v678 = vpop.permute.xlu0 %677
    %679 = vrot.lane.b32.xlu0 %v555, 1
    %v680 = vpop.permute.xlu0 %679
    %681 = vrot.lane.b32.xlu0 %v509, 1
    %v682 = vpop.permute.xlu0 %681
    %683 = vrot.lane.b32.xlu0 %v563, 1
    %v684 = vpop.permute.xlu0 %683
    %685 = vrot.lane.b32.xlu0 %v556, 1
    %v686 = vpop.permute.xlu0 %685
    %687 = vrot.lane.b32.xlu0 %v512, 1
    %v688 = vpop.permute.xlu0 %687
    %689 = vrot.lane.b32.xlu0 %v564, 1
    %v690 = vpop.permute.xlu0 %689
    %691 = vrot.lane.b32.xlu0 %v557, 1
    %v692 = vpop.permute.xlu0 %691
    %693 = vrot.lane.b32.xlu0 %v515, 1
    %v694 = vpop.permute.xlu0 %693
    %695 = vrot.lane.b32.xlu0 %v565, 1
    %v696 = vpop.permute.xlu0 %695
    %697 = vrot.lane.b32.xlu0 %v558, 1
    %v698 = vpop.permute.xlu0 %697
    %699 = vrot.lane.b32.xlu0 %v518, 1
    %v700 = vpop.permute.xlu0 %699
    %701 = vrot.lane.b32.xlu0 %v566, 1
    %v702 = vpop.permute.xlu0 %701
    %727 = vrot.lane.b32.xlu0 %v551, 3
    %v728 = vpop.permute.xlu0 %727
    %729 = vrot.lane.b32.xlu0 %v497, 3
    %v730 = vpop.permute.xlu0 %729
    %731 = vrot.lane.b32.xlu0 %v559, 3
    %v732 = vpop.permute.xlu0 %731
    %733 = vrot.lane.b32.xlu0 %v552, 3
    %v734 = vpop.permute.xlu0 %733
    %735 = vrot.lane.b32.xlu0 %v500, 3
    %v736 = vpop.permute.xlu0 %735
    %737 = vrot.lane.b32.xlu0 %v560, 3
    %v738 = vpop.permute.xlu0 %737
    %739 = vrot.lane.b32.xlu0 %v553, 3
    %v740 = vpop.permute.xlu0 %739
    %741 = vrot.lane.b32.xlu0 %v503, 3
    %v742 = vpop.permute.xlu0 %741
    %743 = vrot.lane.b32.xlu0 %v561, 3
    %v744 = vpop.permute.xlu0 %743
    %745 = vrot.lane.b32.xlu0 %v554, 3
    %v746 = vpop.permute.xlu0 %745
    %747 = vrot.lane.b32.xlu0 %v506, 3
    %v748 = vpop.permute.xlu0 %747
    %749 = vrot.lane.b32.xlu0 %v562, 3
    %v750 = vpop.permute.xlu0 %749
    %751 = vrot.lane.b32.xlu0 %v555, 3
    %v752 = vpop.permute.xlu0 %751
    %753 = vrot.lane.b32.xlu0 %v509, 3
    %v754 = vpop.permute.xlu0 %753
    %755 = vrot.lane.b32.xlu0 %v563, 3
    %v756 = vpop.permute.xlu0 %755
    %757 = vrot.lane.b32.xlu0 %v556, 3
    %v758 = vpop.permute.xlu0 %757
    %759 = vrot.lane.b32.xlu0 %v512, 3
    %v760 = vpop.permute.xlu0 %759
    %761 = vrot.lane.b32.xlu0 %v564, 3
    %v762 = vpop.permute.xlu0 %761
    %763 = vrot.lane.b32.xlu0 %v557, 3
    %v764 = vpop.permute.xlu0 %763
    %765 = vrot.lane.b32.xlu0 %v515, 3
    %v766 = vpop.permute.xlu0 %765
    %767 = vrot.lane.b32.xlu0 %v565, 3
    %v768 = vpop.permute.xlu0 %767
    %769 = vrot.lane.b32.xlu0 %v558, 3
    %v770 = vpop.permute.xlu0 %769
    %771 = vrot.lane.b32.xlu0 %v518, 3
    %v772 = vpop.permute.xlu0 %771
    %773 = vrot.lane.b32.xlu0 %v566, 3
    %v774 = vpop.permute.xlu0 %773
    %v799 = vsel %vm413, %v584, %v656
    %v800 = vsel %vm413, %v586, %v658
    %v801 = vsel %vm413, %v588, %v660
    %v802 = vsel %vm413, %v590, %v662
    %v803 = vsel %vm413, %v592, %v664
    %v804 = vsel %vm413, %v594, %v666
    %v805 = vsel %vm413, %v596, %v668
    %v806 = vsel %vm413, %v598, %v670
    %v807 = vsel %vm413, %v600, %v672
    %v808 = vsel %vm413, %v602, %v674
    %v809 = vsel %vm413, %v604, %v676
    %v810 = vsel %vm413, %v606, %v678
    %v811 = vsel %vm413, %v608, %v680
    %v812 = vsel %vm413, %v610, %v682
    %v813 = vsel %vm413, %v612, %v684
    %v814 = vsel %vm413, %v614, %v686
    %v815 = vsel %vm413, %v616, %v688
    %v816 = vsel %vm413, %v618, %v690
    %v817 = vsel %vm413, %v620, %v692
    %v818 = vsel %vm413, %v622, %v694
    %v819 = vsel %vm413, %v624, %v696
    %v820 = vsel %vm413, %v626, %v698
    %v821 = vsel %vm413, %v628, %v700
    %v822 = vsel %vm413, %v630, %v702
    %v823 = vsel %vm438, %v799, %v728
    %v824 = vsel %vm438, %v800, %v730
    %v825 = vsel %vm438, %v801, %v732
    %v826 = vsel %vm438, %v802, %v734
    %v827 = vsel %vm438, %v803, %v736
    %v828 = vsel %vm438, %v804, %v738
    %v829 = vsel %vm438, %v805, %v740
    %v830 = vsel %vm438, %v806, %v742
    %v831 = vsel %vm438, %v807, %v744
    %v832 = vsel %vm438, %v808, %v746
    %v833 = vsel %vm438, %v809, %v748
    %v834 = vsel %vm438, %v810, %v750
    %v835 = vsel %vm438, %v811, %v752
    %v836 = vsel %vm438, %v812, %v754
    %v837 = vsel %vm438, %v813, %v756
    %v838 = vsel %vm438, %v814, %v758
    %v839 = vsel %vm438, %v815, %v760
    %v840 = vsel %vm438, %v816, %v762
    %v841 = vsel %vm438, %v817, %v764
    %v842 = vsel %vm438, %v818, %v766
    %v843 = vsel %vm438, %v819, %v768
    %v844 = vsel %vm438, %v820, %v770
    %v845 = vsel %vm438, %v821, %v772
    %v846 = vsel %vm438, %v822, %v774
    %vm871 = vcmask 1046528
    %v872 = vrot.slane %v439, 1
    %v873 = vrot.slane %v440, 1
    %v874 = vsel %vm871, %v872, %v873
    %v875 = vrot.slane %v441, 1
    %v876 = vsel %vm871, %v873, %v875
    %v877 = vrot.slane %v442, 1
    %v878 = vrot.slane %v443, 1
    %v879 = vsel %vm871, %v877, %v878
    %v880 = vrot.slane %v444, 1
    %v881 = vsel %vm871, %v878, %v880
    %v882 = vrot.slane %v445, 1
    %v883 = vrot.slane %v446, 1
    %v884 = vsel %vm871, %v882, %v883
    %v885 = vrot.slane %v447, 1
    %v886 = vsel %vm871, %v883, %v885
    %v887 = vrot.slane %v448, 1
    %v888 = vrot.slane %v449, 1
    %v889 = vsel %vm871, %v887, %v888
    %v890 = vrot.slane %v450, 1
    %v891 = vsel %vm871, %v888, %v890
    %v892 = vrot.slane %v451, 1
    %v893 = vrot.slane %v452, 1
    %v894 = vsel %vm871, %v892, %v893
    %v895 = vrot.slane %v453, 1
    %v896 = vsel %vm871, %v893, %v895
    %v897 = vrot.slane %v454, 1
    %v898 = vrot.slane %v455, 1
    %v899 = vsel %vm871, %v897, %v898
    %v900 = vrot.slane %v456, 1
    %v901 = vsel %vm871, %v898, %v900
    %v902 = vrot.slane %v457, 1
    %v903 = vrot.slane %v458, 1
    %v904 = vsel %vm871, %v902, %v903
    %v905 = vrot.slane %v459, 1
    %v906 = vsel %vm871, %v903, %v905
    %v907 = vrot.slane %v460, 1
    %v908 = vrot.slane %v461, 1
    %v909 = vsel %vm871, %v907, %v908
    %v910 = vrot.slane %v462, 1
    %v911 = vsel %vm871, %v908, %v910
    %v928 = vadd.f32 %v439, %v874
    %v929 = vadd.f32 %v440, %v876
    %v930 = vadd.f32 %v442, %v879
    %v931 = vadd.f32 %v443, %v881
    %v932 = vadd.f32 %v445, %v884
    %v933 = vadd.f32 %v446, %v886
    %v934 = vadd.f32 %v448, %v889
    %v935 = vadd.f32 %v449, %v891
    %v936 = vadd.f32 %v451, %v894
    %v937 = vadd.f32 %v452, %v896
    %v938 = vadd.f32 %v454, %v899
    %v939 = vadd.f32 %v455, %v901
    %v940 = vadd.f32 %v457, %v904
    %v941 = vadd.f32 %v458, %v906
    %v942 = vadd.f32 %v460, %v909
    %v943 = vadd.f32 %v461, %v911
    %vm944 = vcmask 1045504
    %v945 = vrot.slane %v439, 2
    %v946 = vrot.slane %v440, 2
    %v947 = vsel %vm944, %v945, %v946
    %v948 = vrot.slane %v441, 2
    %v949 = vsel %vm944, %v946, %v948
    %v950 = vrot.slane %v442, 2
    %v951 = vrot.slane %v443, 2
    %v952 = vsel %vm944, %v950, %v951
    %v953 = vrot.slane %v444, 2
    %v954 = vsel %vm944, %v951, %v953
    %v955 = vrot.slane %v445, 2
    %v956 = vrot.slane %v446, 2
    %v957 = vsel %vm944, %v955, %v956
    %v958 = vrot.slane %v447, 2
    %v959 = vsel %vm944, %v956, %v958
    %v960 = vrot.slane %v448, 2
    %v961 = vrot.slane %v449, 2
    %v962 = vsel %vm944, %v960, %v961
    %v963 = vrot.slane %v450, 2
    %v964 = vsel %vm944, %v961, %v963
    %v965 = vrot.slane %v451, 2
    %v966 = vrot.slane %v452, 2
    %v967 = vsel %vm944, %v965, %v966
    %v968 = vrot.slane %v453, 2
    %v969 = vsel %vm944, %v966, %v968
    %v970 = vrot.slane %v454, 2
    %v971 = vrot.slane %v455, 2
    %v972 = vsel %vm944, %v970, %v971
    %v973 = vrot.slane %v456, 2
    %v974 = vsel %vm944, %v971, %v973
    %v975 = vrot.slane %v457, 2
    %v976 = vrot.slane %v458, 2
    %v977 = vsel %vm944, %v975, %v976
    %v978 = vrot.slane %v459, 2
    %v979 = vsel %vm944, %v976, %v978
    %v980 = vrot.slane %v460, 2
    %v981 = vrot.slane %v461, 2
    %v982 = vsel %vm944, %v980, %v981
    %v983 = vrot.slane %v462, 2
    %v984 = vsel %vm944, %v981, %v983
    %v1001 = vadd.f32 %v928, %v947
    %v1002 = vadd.f32 %v929, %v949
    %v1003 = vadd.f32 %v930, %v952
    %v1004 = vadd.f32 %v931, %v954
    %v1005 = vadd.f32 %v932, %v957
    %v1006 = vadd.f32 %v933, %v959
    %v1007 = vadd.f32 %v934, %v962
    %v1008 = vadd.f32 %v935, %v964
    %v1009 = vadd.f32 %v936, %v967
    %v1010 = vadd.f32 %v937, %v969
    %v1011 = vadd.f32 %v938, %v972
    %v1012 = vadd.f32 %v939, %v974
    %v1013 = vadd.f32 %v940, %v977
    %v1014 = vadd.f32 %v941, %v979
    %v1015 = vadd.f32 %v942, %v982
    %v1016 = vadd.f32 %v943, %v984
    %1033 = vrot.lane.b32.xlu0 %v1001, 127
    %v1034 = vpop.permute.xlu0 %1033
    %1035 = vrot.lane.b32.xlu0 %v1002, 127
    %v1036 = vpop.permute.xlu0 %1035
    %1037 = vrot.lane.b32.xlu0 %v1003, 127
    %v1038 = vpop.permute.xlu0 %1037
    %1039 = vrot.lane.b32.xlu0 %v1004, 127
    %v1040 = vpop.permute.xlu0 %1039
    %1041 = vrot.lane.b32.xlu0 %v1005, 127
    %v1042 = vpop.permute.xlu0 %1041
    %1043 = vrot.lane.b32.xlu0 %v1006, 127
    %v1044 = vpop.permute.xlu0 %1043
    %1045 = vrot.lane.b32.xlu0 %v1007, 127
    %v1046 = vpop.permute.xlu0 %1045
    %1047 = vrot.lane.b32.xlu0 %v1008, 127
    %v1048 = vpop.permute.xlu0 %1047
    %1049 = vrot.lane.b32.xlu0 %v1009, 127
    %v1050 = vpop.permute.xlu0 %1049
    %1051 = vrot.lane.b32.xlu0 %v1010, 127
    %v1052 = vpop.permute.xlu0 %1051
    %1053 = vrot.lane.b32.xlu0 %v1011, 127
    %v1054 = vpop.permute.xlu0 %1053
    %1055 = vrot.lane.b32.xlu0 %v1012, 127
    %v1056 = vpop.permute.xlu0 %1055
    %1057 = vrot.lane.b32.xlu0 %v1013, 127
    %v1058 = vpop.permute.xlu0 %1057
    %1059 = vrot.lane.b32.xlu0 %v1014, 127
    %v1060 = vpop.permute.xlu0 %1059
    %1061 = vrot.lane.b32.xlu0 %v1015, 127
    %v1062 = vpop.permute.xlu0 %1061
    %1063 = vrot.lane.b32.xlu0 %v1016, 127
    %v1064 = vpop.permute.xlu0 %1063
    %v1081 = vadd.f32 %v1001, %v1034
    %v1082 = vadd.f32 %v1002, %v1036
    %v1083 = vadd.f32 %v1003, %v1038
    %v1084 = vadd.f32 %v1004, %v1040
    %v1085 = vadd.f32 %v1005, %v1042
    %v1086 = vadd.f32 %v1006, %v1044
    %v1087 = vadd.f32 %v1007, %v1046
    %v1088 = vadd.f32 %v1008, %v1048
    %v1089 = vadd.f32 %v1009, %v1050
    %v1090 = vadd.f32 %v1010, %v1052
    %v1091 = vadd.f32 %v1011, %v1054
    %v1092 = vadd.f32 %v1012, %v1056
    %v1093 = vadd.f32 %v1013, %v1058
    %v1094 = vadd.f32 %v1014, %v1060
    %v1095 = vadd.f32 %v1015, %v1062
    %v1096 = vadd.f32 %v1016, %v1064
    %1097 = vrot.lane.b32.xlu0 %v1001, 126
    %v1098 = vpop.permute.xlu0 %1097
    %1099 = vrot.lane.b32.xlu0 %v1002, 126
    %v1100 = vpop.permute.xlu0 %1099
    %1101 = vrot.lane.b32.xlu0 %v1003, 126
    %v1102 = vpop.permute.xlu0 %1101
    %1103 = vrot.lane.b32.xlu0 %v1004, 126
    %v1104 = vpop.permute.xlu0 %1103
    %1105 = vrot.lane.b32.xlu0 %v1005, 126
    %v1106 = vpop.permute.xlu0 %1105
    %1107 = vrot.lane.b32.xlu0 %v1006, 126
    %v1108 = vpop.permute.xlu0 %1107
    %1109 = vrot.lane.b32.xlu0 %v1007, 126
    %v1110 = vpop.permute.xlu0 %1109
    %1111 = vrot.lane.b32.xlu0 %v1008, 126
    %v1112 = vpop.permute.xlu0 %1111
    %1113 = vrot.lane.b32.xlu0 %v1009, 126
    %v1114 = vpop.permute.xlu0 %1113
    %1115 = vrot.lane.b32.xlu0 %v1010, 126
    %v1116 = vpop.permute.xlu0 %1115
    %1117 = vrot.lane.b32.xlu0 %v1011, 126
    %v1118 = vpop.permute.xlu0 %1117
    %1119 = vrot.lane.b32.xlu0 %v1012, 126
    %v1120 = vpop.permute.xlu0 %1119
    %1121 = vrot.lane.b32.xlu0 %v1013, 126
    %v1122 = vpop.permute.xlu0 %1121
    %1123 = vrot.lane.b32.xlu0 %v1014, 126
    %v1124 = vpop.permute.xlu0 %1123
    %1125 = vrot.lane.b32.xlu0 %v1015, 126
    %v1126 = vpop.permute.xlu0 %1125
    %1127 = vrot.lane.b32.xlu0 %v1016, 126
    %v1128 = vpop.permute.xlu0 %1127
    %v1145 = vadd.f32 %v1081, %v1098
    %v1146 = vadd.f32 %v1082, %v1100
    %v1147 = vadd.f32 %v1083, %v1102
    %v1148 = vadd.f32 %v1084, %v1104
    %v1149 = vadd.f32 %v1085, %v1106
    %v1150 = vadd.f32 %v1086, %v1108
    %v1151 = vadd.f32 %v1087, %v1110
    %v1152 = vadd.f32 %v1088, %v1112
    %v1153 = vadd.f32 %v1089, %v1114
    %v1154 = vadd.f32 %v1090, %v1116
    %v1155 = vadd.f32 %v1091, %v1118
    %v1156 = vadd.f32 %v1092, %v1120
    %v1157 = vadd.f32 %v1093, %v1122
    %v1158 = vadd.f32 %v1094, %v1124
    %v1159 = vadd.f32 %v1095, %v1126
    %v1160 = vadd.f32 %v1096, %v1128
    %v1161 = vmul.f32 %v1145, 0.11111111
    %v1162 = vmul.f32 %v1146, 0.11111111
    %v1163 = vmul.f32 %v1147, 0.11111111
    %v1164 = vmul.f32 %v1148, 0.11111111
    %v1165 = vmul.f32 %v1149, 0.11111111
    %v1166 = vmul.f32 %v1150, 0.11111111
    %v1167 = vmul.f32 %v1151, 0.11111111
    %v1168 = vmul.f32 %v1152, 0.11111111
    %v1169 = vmul.f32 %v1153, 0.11111111
    %v1170 = vmul.f32 %v1154, 0.11111111
    %v1171 = vmul.f32 %v1155, 0.11111111
    %v1172 = vmul.f32 %v1156, 0.11111111
    %v1173 = vmul.f32 %v1157, 0.11111111
    %v1174 = vmul.f32 %v1158, 0.11111111
    %v1175 = vmul.f32 %v1159, 0.11111111
    %v1176 = vmul.f32 %v1160, 0.11111111
    %v1201 = vrot.slane %v823, 1
    %v1202 = vrot.slane %v824, 1
    %v1203 = vsel %vm871, %v1201, %v1202
    %v1204 = vrot.slane %v825, 1
    %v1205 = vsel %vm871, %v1202, %v1204
    %v1206 = vrot.slane %v826, 1
    %v1207 = vrot.slane %v827, 1
    %v1208 = vsel %vm871, %v1206, %v1207
    %v1209 = vrot.slane %v828, 1
    %v1210 = vsel %vm871, %v1207, %v1209
    %v1211 = vrot.slane %v829, 1
    %v1212 = vrot.slane %v830, 1
    %v1213 = vsel %vm871, %v1211, %v1212
    %v1214 = vrot.slane %v831, 1
    %v1215 = vsel %vm871, %v1212, %v1214
    %v1216 = vrot.slane %v832, 1
    %v1217 = vrot.slane %v833, 1
    %v1218 = vsel %vm871, %v1216, %v1217
    %v1219 = vrot.slane %v834, 1
    %v1220 = vsel %vm871, %v1217, %v1219
    %v1221 = vrot.slane %v835, 1
    %v1222 = vrot.slane %v836, 1
    %v1223 = vsel %vm871, %v1221, %v1222
    %v1224 = vrot.slane %v837, 1
    %v1225 = vsel %vm871, %v1222, %v1224
    %v1226 = vrot.slane %v838, 1
    %v1227 = vrot.slane %v839, 1
    %v1228 = vsel %vm871, %v1226, %v1227
    %v1229 = vrot.slane %v840, 1
    %v1230 = vsel %vm871, %v1227, %v1229
    %v1231 = vrot.slane %v841, 1
    %v1232 = vrot.slane %v842, 1
    %v1233 = vsel %vm871, %v1231, %v1232
    %v1234 = vrot.slane %v843, 1
    %v1235 = vsel %vm871, %v1232, %v1234
    %v1236 = vrot.slane %v844, 1
    %v1237 = vrot.slane %v845, 1
    %v1238 = vsel %vm871, %v1236, %v1237
    %v1239 = vrot.slane %v846, 1
    %v1240 = vsel %vm871, %v1237, %v1239
    %v1257 = vadd.f32 %v823, %v1203
    %v1258 = vadd.f32 %v824, %v1205
    %v1259 = vadd.f32 %v826, %v1208
    %v1260 = vadd.f32 %v827, %v1210
    %v1261 = vadd.f32 %v829, %v1213
    %v1262 = vadd.f32 %v830, %v1215
    %v1263 = vadd.f32 %v832, %v1218
    %v1264 = vadd.f32 %v833, %v1220
    %v1265 = vadd.f32 %v835, %v1223
    %v1266 = vadd.f32 %v836, %v1225
    %v1267 = vadd.f32 %v838, %v1228
    %v1268 = vadd.f32 %v839, %v1230
    %v1269 = vadd.f32 %v841, %v1233
    %v1270 = vadd.f32 %v842, %v1235
    %v1271 = vadd.f32 %v844, %v1238
    %v1272 = vadd.f32 %v845, %v1240
    %v1273 = vrot.slane %v823, 2
    %v1274 = vrot.slane %v824, 2
    %v1275 = vsel %vm944, %v1273, %v1274
    %v1276 = vrot.slane %v825, 2
    %v1277 = vsel %vm944, %v1274, %v1276
    %v1278 = vrot.slane %v826, 2
    %v1279 = vrot.slane %v827, 2
    %v1280 = vsel %vm944, %v1278, %v1279
    %v1281 = vrot.slane %v828, 2
    %v1282 = vsel %vm944, %v1279, %v1281
    %v1283 = vrot.slane %v829, 2
    %v1284 = vrot.slane %v830, 2
    %v1285 = vsel %vm944, %v1283, %v1284
    %v1286 = vrot.slane %v831, 2
    %v1287 = vsel %vm944, %v1284, %v1286
    %v1288 = vrot.slane %v832, 2
    %v1289 = vrot.slane %v833, 2
    %v1290 = vsel %vm944, %v1288, %v1289
    %v1291 = vrot.slane %v834, 2
    %v1292 = vsel %vm944, %v1289, %v1291
    %v1293 = vrot.slane %v835, 2
    %v1294 = vrot.slane %v836, 2
    %v1295 = vsel %vm944, %v1293, %v1294
    %v1296 = vrot.slane %v837, 2
    %v1297 = vsel %vm944, %v1294, %v1296
    %v1298 = vrot.slane %v838, 2
    %v1299 = vrot.slane %v839, 2
    %v1300 = vsel %vm944, %v1298, %v1299
    %v1301 = vrot.slane %v840, 2
    %v1302 = vsel %vm944, %v1299, %v1301
    %v1303 = vrot.slane %v841, 2
    %v1304 = vrot.slane %v842, 2
    %v1305 = vsel %vm944, %v1303, %v1304
    %v1306 = vrot.slane %v843, 2
    %v1307 = vsel %vm944, %v1304, %v1306
    %v1308 = vrot.slane %v844, 2
    %v1309 = vrot.slane %v845, 2
    %v1310 = vsel %vm944, %v1308, %v1309
    %v1311 = vrot.slane %v846, 2
    %v1312 = vsel %vm944, %v1309, %v1311
    %v1329 = vadd.f32 %v1257, %v1275
    %v1330 = vadd.f32 %v1258, %v1277
    %v1331 = vadd.f32 %v1259, %v1280
    %v1332 = vadd.f32 %v1260, %v1282
    %v1333 = vadd.f32 %v1261, %v1285
    %v1334 = vadd.f32 %v1262, %v1287
    %v1335 = vadd.f32 %v1263, %v1290
    %v1336 = vadd.f32 %v1264, %v1292
    %v1337 = vadd.f32 %v1265, %v1295
    %v1338 = vadd.f32 %v1266, %v1297
    %v1339 = vadd.f32 %v1267, %v1300
    %v1340 = vadd.f32 %v1268, %v1302
    %v1341 = vadd.f32 %v1269, %v1305
    %v1342 = vadd.f32 %v1270, %v1307
    %v1343 = vadd.f32 %v1271, %v1310
    %v1344 = vadd.f32 %v1272, %v1312
    %1361 = vrot.lane.b32.xlu0 %v1329, 127
    %v1362 = vpop.permute.xlu0 %1361
    %1363 = vrot.lane.b32.xlu0 %v1330, 127
    %v1364 = vpop.permute.xlu0 %1363
    %1365 = vrot.lane.b32.xlu0 %v1331, 127
    %v1366 = vpop.permute.xlu0 %1365
    %1367 = vrot.lane.b32.xlu0 %v1332, 127
    %v1368 = vpop.permute.xlu0 %1367
    %1369 = vrot.lane.b32.xlu0 %v1333, 127
    %v1370 = vpop.permute.xlu0 %1369
    %1371 = vrot.lane.b32.xlu0 %v1334, 127
    %v1372 = vpop.permute.xlu0 %1371
    %1373 = vrot.lane.b32.xlu0 %v1335, 127
    %v1374 = vpop.permute.xlu0 %1373
    %1375 = vrot.lane.b32.xlu0 %v1336, 127
    %v1376 = vpop.permute.xlu0 %1375
    %1377 = vrot.lane.b32.xlu0 %v1337, 127
    %v1378 = vpop.permute.xlu0 %1377
    %1379 = vrot.lane.b32.xlu0 %v1338, 127
    %v1380 = vpop.permute.xlu0 %1379
    %1381 = vrot.lane.b32.xlu0 %v1339, 127
    %v1382 = vpop.permute.xlu0 %1381
    %1383 = vrot.lane.b32.xlu0 %v1340, 127
    %v1384 = vpop.permute.xlu0 %1383
    %1385 = vrot.lane.b32.xlu0 %v1341, 127
    %v1386 = vpop.permute.xlu0 %1385
    %1387 = vrot.lane.b32.xlu0 %v1342, 127
    %v1388 = vpop.permute.xlu0 %1387
    %1389 = vrot.lane.b32.xlu0 %v1343, 127
    %v1390 = vpop.permute.xlu0 %1389
    %1391 = vrot.lane.b32.xlu0 %v1344, 127
    %v1392 = vpop.permute.xlu0 %1391
    %v1409 = vadd.f32 %v1329, %v1362
    %v1410 = vadd.f32 %v1330, %v1364
    %v1411 = vadd.f32 %v1331, %v1366
    %v1412 = vadd.f32 %v1332, %v1368
    %v1413 = vadd.f32 %v1333, %v1370
    %v1414 = vadd.f32 %v1334, %v1372
    %v1415 = vadd.f32 %v1335, %v1374
    %v1416 = vadd.f32 %v1336, %v1376
    %v1417 = vadd.f32 %v1337, %v1378
    %v1418 = vadd.f32 %v1338, %v1380
    %v1419 = vadd.f32 %v1339, %v1382
    %v1420 = vadd.f32 %v1340, %v1384
    %v1421 = vadd.f32 %v1341, %v1386
    %v1422 = vadd.f32 %v1342, %v1388
    %v1423 = vadd.f32 %v1343, %v1390
    %v1424 = vadd.f32 %v1344, %v1392
    %1425 = vrot.lane.b32.xlu0 %v1329, 126
    %v1426 = vpop.permute.xlu0 %1425
    %1427 = vrot.lane.b32.xlu0 %v1330, 126
    %v1428 = vpop.permute.xlu0 %1427
    %1429 = vrot.lane.b32.xlu0 %v1331, 126
    %v1430 = vpop.permute.xlu0 %1429
    %1431 = vrot.lane.b32.xlu0 %v1332, 126
    %v1432 = vpop.permute.xlu0 %1431
    %1433 = vrot.lane.b32.xlu0 %v1333, 126
    %v1434 = vpop.permute.xlu0 %1433
    %1435 = vrot.lane.b32.xlu0 %v1334, 126
    %v1436 = vpop.permute.xlu0 %1435
    %1437 = vrot.lane.b32.xlu0 %v1335, 126
    %v1438 = vpop.permute.xlu0 %1437
    %1439 = vrot.lane.b32.xlu0 %v1336, 126
    %v1440 = vpop.permute.xlu0 %1439
    %1441 = vrot.lane.b32.xlu0 %v1337, 126
    %v1442 = vpop.permute.xlu0 %1441
    %1443 = vrot.lane.b32.xlu0 %v1338, 126
    %v1444 = vpop.permute.xlu0 %1443
    %1445 = vrot.lane.b32.xlu0 %v1339, 126
    %v1446 = vpop.permute.xlu0 %1445
    %1447 = vrot.lane.b32.xlu0 %v1340, 126
    %v1448 = vpop.permute.xlu0 %1447
    %1449 = vrot.lane.b32.xlu0 %v1341, 126
    %v1450 = vpop.permute.xlu0 %1449
    %1451 = vrot.lane.b32.xlu0 %v1342, 126
    %v1452 = vpop.permute.xlu0 %1451
    %1453 = vrot.lane.b32.xlu0 %v1343, 126
    %v1454 = vpop.permute.xlu0 %1453
    %1455 = vrot.lane.b32.xlu0 %v1344, 126
    %v1456 = vpop.permute.xlu0 %1455
    %v1473 = vadd.f32 %v1409, %v1426
    %v1474 = vadd.f32 %v1410, %v1428
    %v1475 = vadd.f32 %v1411, %v1430
    %v1476 = vadd.f32 %v1412, %v1432
    %v1477 = vadd.f32 %v1413, %v1434
    %v1478 = vadd.f32 %v1414, %v1436
    %v1479 = vadd.f32 %v1415, %v1438
    %v1480 = vadd.f32 %v1416, %v1440
    %v1481 = vadd.f32 %v1417, %v1442
    %v1482 = vadd.f32 %v1418, %v1444
    %v1483 = vadd.f32 %v1419, %v1446
    %v1484 = vadd.f32 %v1420, %v1448
    %v1485 = vadd.f32 %v1421, %v1450
    %v1486 = vadd.f32 %v1422, %v1452
    %v1487 = vadd.f32 %v1423, %v1454
    %v1488 = vadd.f32 %v1424, %v1456
    %v1489 = vmul.f32 %v1473, 0.11111111
    %v1490 = vmul.f32 %v1474, 0.11111111
    %v1491 = vmul.f32 %v1475, 0.11111111
    %v1492 = vmul.f32 %v1476, 0.11111111
    %v1493 = vmul.f32 %v1477, 0.11111111
    %v1494 = vmul.f32 %v1478, 0.11111111
    %v1495 = vmul.f32 %v1479, 0.11111111
    %v1496 = vmul.f32 %v1480, 0.11111111
    %v1497 = vmul.f32 %v1481, 0.11111111
    %v1498 = vmul.f32 %v1482, 0.11111111
    %v1499 = vmul.f32 %v1483, 0.11111111
    %v1500 = vmul.f32 %v1484, 0.11111111
    %v1501 = vmul.f32 %v1485, 0.11111111
    %v1502 = vmul.f32 %v1486, 0.11111111
    %v1503 = vmul.f32 %v1487, 0.11111111
    %v1504 = vmul.f32 %v1488, 0.11111111
    %v1505 = vmul.f32 %v439, %v439
    %v1506 = vmul.f32 %v440, %v440
    %v1507 = vmul.f32 %v441, %v441
    %v1508 = vmul.f32 %v442, %v442
    %v1509 = vmul.f32 %v443, %v443
    %v1510 = vmul.f32 %v444, %v444
    %v1511 = vmul.f32 %v445, %v445
    %v1512 = vmul.f32 %v446, %v446
    %v1513 = vmul.f32 %v447, %v447
    %v1514 = vmul.f32 %v448, %v448
    %v1515 = vmul.f32 %v449, %v449
    %v1516 = vmul.f32 %v450, %v450
    %v1517 = vmul.f32 %v451, %v451
    %v1518 = vmul.f32 %v452, %v452
    %v1519 = vmul.f32 %v453, %v453
    %v1520 = vmul.f32 %v454, %v454
    %v1521 = vmul.f32 %v455, %v455
    %v1522 = vmul.f32 %v456, %v456
    %v1523 = vmul.f32 %v457, %v457
    %v1524 = vmul.f32 %v458, %v458
    %v1525 = vmul.f32 %v459, %v459
    %v1526 = vmul.f32 %v460, %v460
    %v1527 = vmul.f32 %v461, %v461
    %v1528 = vmul.f32 %v462, %v462
    %v1553 = vrot.slane %v1505, 1
    %v1554 = vrot.slane %v1506, 1
    %v1555 = vsel %vm871, %v1553, %v1554
    %v1556 = vrot.slane %v1507, 1
    %v1557 = vsel %vm871, %v1554, %v1556
    %v1558 = vrot.slane %v1508, 1
    %v1559 = vrot.slane %v1509, 1
    %v1560 = vsel %vm871, %v1558, %v1559
    %v1561 = vrot.slane %v1510, 1
    %v1562 = vsel %vm871, %v1559, %v1561
    %v1563 = vrot.slane %v1511, 1
    %v1564 = vrot.slane %v1512, 1
    %v1565 = vsel %vm871, %v1563, %v1564
    %v1566 = vrot.slane %v1513, 1
    %v1567 = vsel %vm871, %v1564, %v1566
    %v1568 = vrot.slane %v1514, 1
    %v1569 = vrot.slane %v1515, 1
    %v1570 = vsel %vm871, %v1568, %v1569
    %v1571 = vrot.slane %v1516, 1
    %v1572 = vsel %vm871, %v1569, %v1571
    %v1573 = vrot.slane %v1517, 1
    %v1574 = vrot.slane %v1518, 1
    %v1575 = vsel %vm871, %v1573, %v1574
    %v1576 = vrot.slane %v1519, 1
    %v1577 = vsel %vm871, %v1574, %v1576
    %v1578 = vrot.slane %v1520, 1
    %v1579 = vrot.slane %v1521, 1
    %v1580 = vsel %vm871, %v1578, %v1579
    %v1581 = vrot.slane %v1522, 1
    %v1582 = vsel %vm871, %v1579, %v1581
    %v1583 = vrot.slane %v1523, 1
    %v1584 = vrot.slane %v1524, 1
    %v1585 = vsel %vm871, %v1583, %v1584
    %v1586 = vrot.slane %v1525, 1
    %v1587 = vsel %vm871, %v1584, %v1586
    %v1588 = vrot.slane %v1526, 1
    %v1589 = vrot.slane %v1527, 1
    %v1590 = vsel %vm871, %v1588, %v1589
    %v1591 = vrot.slane %v1528, 1
    %v1592 = vsel %vm871, %v1589, %v1591
    %v1609 = vadd.f32 %v1505, %v1555
    %v1610 = vadd.f32 %v1506, %v1557
    %v1611 = vadd.f32 %v1508, %v1560
    %v1612 = vadd.f32 %v1509, %v1562
    %v1613 = vadd.f32 %v1511, %v1565
    %v1614 = vadd.f32 %v1512, %v1567
    %v1615 = vadd.f32 %v1514, %v1570
    %v1616 = vadd.f32 %v1515, %v1572
    %v1617 = vadd.f32 %v1517, %v1575
    %v1618 = vadd.f32 %v1518, %v1577
    %v1619 = vadd.f32 %v1520, %v1580
    %v1620 = vadd.f32 %v1521, %v1582
    %v1621 = vadd.f32 %v1523, %v1585
    %v1622 = vadd.f32 %v1524, %v1587
    %v1623 = vadd.f32 %v1526, %v1590
    %v1624 = vadd.f32 %v1527, %v1592
    %v1625 = vrot.slane %v1505, 2
    %v1626 = vrot.slane %v1506, 2
    %v1627 = vsel %vm944, %v1625, %v1626
    %v1628 = vrot.slane %v1507, 2
    %v1629 = vsel %vm944, %v1626, %v1628
    %v1630 = vrot.slane %v1508, 2
    %v1631 = vrot.slane %v1509, 2
    %v1632 = vsel %vm944, %v1630, %v1631
    %v1633 = vrot.slane %v1510, 2
    %v1634 = vsel %vm944, %v1631, %v1633
    %v1635 = vrot.slane %v1511, 2
    %v1636 = vrot.slane %v1512, 2
    %v1637 = vsel %vm944, %v1635, %v1636
    %v1638 = vrot.slane %v1513, 2
    %v1639 = vsel %vm944, %v1636, %v1638
    %v1640 = vrot.slane %v1514, 2
    %v1641 = vrot.slane %v1515, 2
    %v1642 = vsel %vm944, %v1640, %v1641
    %v1643 = vrot.slane %v1516, 2
    %v1644 = vsel %vm944, %v1641, %v1643
    %v1645 = vrot.slane %v1517, 2
    %v1646 = vrot.slane %v1518, 2
    %v1647 = vsel %vm944, %v1645, %v1646
    %v1648 = vrot.slane %v1519, 2
    %v1649 = vsel %vm944, %v1646, %v1648
    %v1650 = vrot.slane %v1520, 2
    %v1651 = vrot.slane %v1521, 2
    %v1652 = vsel %vm944, %v1650, %v1651
    %v1653 = vrot.slane %v1522, 2
    %v1654 = vsel %vm944, %v1651, %v1653
    %v1655 = vrot.slane %v1523, 2
    %v1656 = vrot.slane %v1524, 2
    %v1657 = vsel %vm944, %v1655, %v1656
    %v1658 = vrot.slane %v1525, 2
    %v1659 = vsel %vm944, %v1656, %v1658
    %v1660 = vrot.slane %v1526, 2
    %v1661 = vrot.slane %v1527, 2
    %v1662 = vsel %vm944, %v1660, %v1661
    %v1663 = vrot.slane %v1528, 2
    %v1664 = vsel %vm944, %v1661, %v1663
    %v1681 = vadd.f32 %v1609, %v1627
    %v1682 = vadd.f32 %v1610, %v1629
    %v1683 = vadd.f32 %v1611, %v1632
    %v1684 = vadd.f32 %v1612, %v1634
    %v1685 = vadd.f32 %v1613, %v1637
    %v1686 = vadd.f32 %v1614, %v1639
    %v1687 = vadd.f32 %v1615, %v1642
    %v1688 = vadd.f32 %v1616, %v1644
    %v1689 = vadd.f32 %v1617, %v1647
    %v1690 = vadd.f32 %v1618, %v1649
    %v1691 = vadd.f32 %v1619, %v1652
    %v1692 = vadd.f32 %v1620, %v1654
    %v1693 = vadd.f32 %v1621, %v1657
    %v1694 = vadd.f32 %v1622, %v1659
    %v1695 = vadd.f32 %v1623, %v1662
    %v1696 = vadd.f32 %v1624, %v1664
    %1713 = vrot.lane.b32.xlu0 %v1681, 127
    %v1714 = vpop.permute.xlu0 %1713
    %1715 = vrot.lane.b32.xlu0 %v1682, 127
    %v1716 = vpop.permute.xlu0 %1715
    %1717 = vrot.lane.b32.xlu0 %v1683, 127
    %v1718 = vpop.permute.xlu0 %1717
    %1719 = vrot.lane.b32.xlu0 %v1684, 127
    %v1720 = vpop.permute.xlu0 %1719
    %1721 = vrot.lane.b32.xlu0 %v1685, 127
    %v1722 = vpop.permute.xlu0 %1721
    %1723 = vrot.lane.b32.xlu0 %v1686, 127
    %v1724 = vpop.permute.xlu0 %1723
    %1725 = vrot.lane.b32.xlu0 %v1687, 127
    %v1726 = vpop.permute.xlu0 %1725
    %1727 = vrot.lane.b32.xlu0 %v1688, 127
    %v1728 = vpop.permute.xlu0 %1727
    %1729 = vrot.lane.b32.xlu0 %v1689, 127
    %v1730 = vpop.permute.xlu0 %1729
    %1731 = vrot.lane.b32.xlu0 %v1690, 127
    %v1732 = vpop.permute.xlu0 %1731
    %1733 = vrot.lane.b32.xlu0 %v1691, 127
    %v1734 = vpop.permute.xlu0 %1733
    %1735 = vrot.lane.b32.xlu0 %v1692, 127
    %v1736 = vpop.permute.xlu0 %1735
    %1737 = vrot.lane.b32.xlu0 %v1693, 127
    %v1738 = vpop.permute.xlu0 %1737
    %1739 = vrot.lane.b32.xlu0 %v1694, 127
    %v1740 = vpop.permute.xlu0 %1739
    %1741 = vrot.lane.b32.xlu0 %v1695, 127
    %v1742 = vpop.permute.xlu0 %1741
    %1743 = vrot.lane.b32.xlu0 %v1696, 127
    %v1744 = vpop.permute.xlu0 %1743
    %v1761 = vadd.f32 %v1681, %v1714
    %v1762 = vadd.f32 %v1682, %v1716
    %v1763 = vadd.f32 %v1683, %v1718
    %v1764 = vadd.f32 %v1684, %v1720
    %v1765 = vadd.f32 %v1685, %v1722
    %v1766 = vadd.f32 %v1686, %v1724
    %v1767 = vadd.f32 %v1687, %v1726
    %v1768 = vadd.f32 %v1688, %v1728
    %v1769 = vadd.f32 %v1689, %v1730
    %v1770 = vadd.f32 %v1690, %v1732
    %v1771 = vadd.f32 %v1691, %v1734
    %v1772 = vadd.f32 %v1692, %v1736
    %v1773 = vadd.f32 %v1693, %v1738
    %v1774 = vadd.f32 %v1694, %v1740
    %v1775 = vadd.f32 %v1695, %v1742
    %v1776 = vadd.f32 %v1696, %v1744
    %1777 = vrot.lane.b32.xlu0 %v1681, 126
    %v1778 = vpop.permute.xlu0 %1777
    %1779 = vrot.lane.b32.xlu0 %v1682, 126
    %v1780 = vpop.permute.xlu0 %1779
    %1781 = vrot.lane.b32.xlu0 %v1683, 126
    %v1782 = vpop.permute.xlu0 %1781
    %1783 = vrot.lane.b32.xlu0 %v1684, 126
    %v1784 = vpop.permute.xlu0 %1783
    %1785 = vrot.lane.b32.xlu0 %v1685, 126
    %v1786 = vpop.permute.xlu0 %1785
    %1787 = vrot.lane.b32.xlu0 %v1686, 126
    %v1788 = vpop.permute.xlu0 %1787
    %1789 = vrot.lane.b32.xlu0 %v1687, 126
    %v1790 = vpop.permute.xlu0 %1789
    %1791 = vrot.lane.b32.xlu0 %v1688, 126
    %v1792 = vpop.permute.xlu0 %1791
    %1793 = vrot.lane.b32.xlu0 %v1689, 126
    %v1794 = vpop.permute.xlu0 %1793
    %1795 = vrot.lane.b32.xlu0 %v1690, 126
    %v1796 = vpop.permute.xlu0 %1795
    %1797 = vrot.lane.b32.xlu0 %v1691, 126
    %v1798 = vpop.permute.xlu0 %1797
    %1799 = vrot.lane.b32.xlu0 %v1692, 126
    %v1800 = vpop.permute.xlu0 %1799
    %1801 = vrot.lane.b32.xlu0 %v1693, 126
    %v1802 = vpop.permute.xlu0 %1801
    %1803 = vrot.lane.b32.xlu0 %v1694, 126
    %v1804 = vpop.permute.xlu0 %1803
    %1805 = vrot.lane.b32.xlu0 %v1695, 126
    %v1806 = vpop.permute.xlu0 %1805
    %1807 = vrot.lane.b32.xlu0 %v1696, 126
    %v1808 = vpop.permute.xlu0 %1807
    %v1825 = vadd.f32 %v1761, %v1778
    %v1826 = vadd.f32 %v1762, %v1780
    %v1827 = vadd.f32 %v1763, %v1782
    %v1828 = vadd.f32 %v1764, %v1784
    %v1829 = vadd.f32 %v1765, %v1786
    %v1830 = vadd.f32 %v1766, %v1788
    %v1831 = vadd.f32 %v1767, %v1790
    %v1832 = vadd.f32 %v1768, %v1792
    %v1833 = vadd.f32 %v1769, %v1794
    %v1834 = vadd.f32 %v1770, %v1796
    %v1835 = vadd.f32 %v1771, %v1798
    %v1836 = vadd.f32 %v1772, %v1800
    %v1837 = vadd.f32 %v1773, %v1802
    %v1838 = vadd.f32 %v1774, %v1804
    %v1839 = vadd.f32 %v1775, %v1806
    %v1840 = vadd.f32 %v1776, %v1808
    %v1841 = vmul.f32 %v1825, 0.11111111
    %v1842 = vmul.f32 %v1826, 0.11111111
    %v1843 = vmul.f32 %v1827, 0.11111111
    %v1844 = vmul.f32 %v1828, 0.11111111
    %v1845 = vmul.f32 %v1829, 0.11111111
    %v1846 = vmul.f32 %v1830, 0.11111111
    %v1847 = vmul.f32 %v1831, 0.11111111
    %v1848 = vmul.f32 %v1832, 0.11111111
    %v1849 = vmul.f32 %v1833, 0.11111111
    %v1850 = vmul.f32 %v1834, 0.11111111
    %v1851 = vmul.f32 %v1835, 0.11111111
    %v1852 = vmul.f32 %v1836, 0.11111111
    %v1853 = vmul.f32 %v1837, 0.11111111
    %v1854 = vmul.f32 %v1838, 0.11111111
    %v1855 = vmul.f32 %v1839, 0.11111111
    %v1856 = vmul.f32 %v1840, 0.11111111
    %v1857 = vmul.f32 %v1161, %v1161
    %v1858 = vmul.f32 %v1162, %v1162
    %v1859 = vmul.f32 %v1163, %v1163
    %v1860 = vmul.f32 %v1164, %v1164
    %v1861 = vmul.f32 %v1165, %v1165
    %v1862 = vmul.f32 %v1166, %v1166
    %v1863 = vmul.f32 %v1167, %v1167
    %v1864 = vmul.f32 %v1168, %v1168
    %v1865 = vmul.f32 %v1169, %v1169
    %v1866 = vmul.f32 %v1170, %v1170
    %v1867 = vmul.f32 %v1171, %v1171
    %v1868 = vmul.f32 %v1172, %v1172
    %v1869 = vmul.f32 %v1173, %v1173
    %v1870 = vmul.f32 %v1174, %v1174
    %v1871 = vmul.f32 %v1175, %v1175
    %v1872 = vmul.f32 %v1176, %v1176
    %v1873 = vsub.f32 %v1841, %v1857
    %v1874 = vsub.f32 %v1842, %v1858
    %v1875 = vsub.f32 %v1843, %v1859
    %v1876 = vsub.f32 %v1844, %v1860
    %v1877 = vsub.f32 %v1845, %v1861
    %v1878 = vsub.f32 %v1846, %v1862
    %v1879 = vsub.f32 %v1847, %v1863
    %v1880 = vsub.f32 %v1848, %v1864
    %v1881 = vsub.f32 %v1849, %v1865
    %v1882 = vsub.f32 %v1850, %v1866
    %v1883 = vsub.f32 %v1851, %v1867
    %v1884 = vsub.f32 %v1852, %v1868
    %v1885 = vsub.f32 %v1853, %v1869
    %v1886 = vsub.f32 %v1854, %v1870
    %v1887 = vsub.f32 %v1855, %v1871
    %v1888 = vsub.f32 %v1856, %v1872
    %v1889 = vmul.f32 %v823, %v823
    %v1890 = vmul.f32 %v824, %v824
    %v1891 = vmul.f32 %v825, %v825
    %v1892 = vmul.f32 %v826, %v826
    %v1893 = vmul.f32 %v827, %v827
    %v1894 = vmul.f32 %v828, %v828
    %v1895 = vmul.f32 %v829, %v829
    %v1896 = vmul.f32 %v830, %v830
    %v1897 = vmul.f32 %v831, %v831
    %v1898 = vmul.f32 %v832, %v832
    %v1899 = vmul.f32 %v833, %v833
    %v1900 = vmul.f32 %v834, %v834
    %v1901 = vmul.f32 %v835, %v835
    %v1902 = vmul.f32 %v836, %v836
    %v1903 = vmul.f32 %v837, %v837
    %v1904 = vmul.f32 %v838, %v838
    %v1905 = vmul.f32 %v839, %v839
    %v1906 = vmul.f32 %v840, %v840
    %v1907 = vmul.f32 %v841, %v841
    %v1908 = vmul.f32 %v842, %v842
    %v1909 = vmul.f32 %v843, %v843
    %v1910 = vmul.f32 %v844, %v844
    %v1911 = vmul.f32 %v845, %v845
    %v1912 = vmul.f32 %v846, %v846
    %v1937 = vrot.slane %v1889, 1
    %v1938 = vrot.slane %v1890, 1
    %v1939 = vsel %vm871, %v1937, %v1938
    %v1940 = vrot.slane %v1891, 1
    %v1941 = vsel %vm871, %v1938, %v1940
    %v1942 = vrot.slane %v1892, 1
    %v1943 = vrot.slane %v1893, 1
    %v1944 = vsel %vm871, %v1942, %v1943
    %v1945 = vrot.slane %v1894, 1
    %v1946 = vsel %vm871, %v1943, %v1945
    %v1947 = vrot.slane %v1895, 1
    %v1948 = vrot.slane %v1896, 1
    %v1949 = vsel %vm871, %v1947, %v1948
    %v1950 = vrot.slane %v1897, 1
    %v1951 = vsel %vm871, %v1948, %v1950
    %v1952 = vrot.slane %v1898, 1
    %v1953 = vrot.slane %v1899, 1
    %v1954 = vsel %vm871, %v1952, %v1953
    %v1955 = vrot.slane %v1900, 1
    %v1956 = vsel %vm871, %v1953, %v1955
    %v1957 = vrot.slane %v1901, 1
    %v1958 = vrot.slane %v1902, 1
    %v1959 = vsel %vm871, %v1957, %v1958
    %v1960 = vrot.slane %v1903, 1
    %v1961 = vsel %vm871, %v1958, %v1960
    %v1962 = vrot.slane %v1904, 1
    %v1963 = vrot.slane %v1905, 1
    %v1964 = vsel %vm871, %v1962, %v1963
    %v1965 = vrot.slane %v1906, 1
    %v1966 = vsel %vm871, %v1963, %v1965
    %v1967 = vrot.slane %v1907, 1
    %v1968 = vrot.slane %v1908, 1
    %v1969 = vsel %vm871, %v1967, %v1968
    %v1970 = vrot.slane %v1909, 1
    %v1971 = vsel %vm871, %v1968, %v1970
    %v1972 = vrot.slane %v1910, 1
    %v1973 = vrot.slane %v1911, 1
    %v1974 = vsel %vm871, %v1972, %v1973
    %v1975 = vrot.slane %v1912, 1
    %v1976 = vsel %vm871, %v1973, %v1975
    %v1993 = vadd.f32 %v1889, %v1939
    %v1994 = vadd.f32 %v1890, %v1941
    %v1995 = vadd.f32 %v1892, %v1944
    %v1996 = vadd.f32 %v1893, %v1946
    %v1997 = vadd.f32 %v1895, %v1949
    %v1998 = vadd.f32 %v1896, %v1951
    %v1999 = vadd.f32 %v1898, %v1954
    %v2000 = vadd.f32 %v1899, %v1956
    %v2001 = vadd.f32 %v1901, %v1959
    %v2002 = vadd.f32 %v1902, %v1961
    %v2003 = vadd.f32 %v1904, %v1964
    %v2004 = vadd.f32 %v1905, %v1966
    %v2005 = vadd.f32 %v1907, %v1969
    %v2006 = vadd.f32 %v1908, %v1971
    %v2007 = vadd.f32 %v1910, %v1974
    %v2008 = vadd.f32 %v1911, %v1976
    %v2009 = vrot.slane %v1889, 2
    %v2010 = vrot.slane %v1890, 2
    %v2011 = vsel %vm944, %v2009, %v2010
    %v2012 = vrot.slane %v1891, 2
    %v2013 = vsel %vm944, %v2010, %v2012
    %v2014 = vrot.slane %v1892, 2
    %v2015 = vrot.slane %v1893, 2
    %v2016 = vsel %vm944, %v2014, %v2015
    %v2017 = vrot.slane %v1894, 2
    %v2018 = vsel %vm944, %v2015, %v2017
    %v2019 = vrot.slane %v1895, 2
    %v2020 = vrot.slane %v1896, 2
    %v2021 = vsel %vm944, %v2019, %v2020
    %v2022 = vrot.slane %v1897, 2
    %v2023 = vsel %vm944, %v2020, %v2022
    %v2024 = vrot.slane %v1898, 2
    %v2025 = vrot.slane %v1899, 2
    %v2026 = vsel %vm944, %v2024, %v2025
    %v2027 = vrot.slane %v1900, 2
    %v2028 = vsel %vm944, %v2025, %v2027
    %v2029 = vrot.slane %v1901, 2
    %v2030 = vrot.slane %v1902, 2
    %v2031 = vsel %vm944, %v2029, %v2030
    %v2032 = vrot.slane %v1903, 2
    %v2033 = vsel %vm944, %v2030, %v2032
    %v2034 = vrot.slane %v1904, 2
    %v2035 = vrot.slane %v1905, 2
    %v2036 = vsel %vm944, %v2034, %v2035
    %v2037 = vrot.slane %v1906, 2
    %v2038 = vsel %vm944, %v2035, %v2037
    %v2039 = vrot.slane %v1907, 2
    %v2040 = vrot.slane %v1908, 2
    %v2041 = vsel %vm944, %v2039, %v2040
    %v2042 = vrot.slane %v1909, 2
    %v2043 = vsel %vm944, %v2040, %v2042
    %v2044 = vrot.slane %v1910, 2
    %v2045 = vrot.slane %v1911, 2
    %v2046 = vsel %vm944, %v2044, %v2045
    %v2047 = vrot.slane %v1912, 2
    %v2048 = vsel %vm944, %v2045, %v2047
    %v2065 = vadd.f32 %v1993, %v2011
    %v2066 = vadd.f32 %v1994, %v2013
    %v2067 = vadd.f32 %v1995, %v2016
    %v2068 = vadd.f32 %v1996, %v2018
    %v2069 = vadd.f32 %v1997, %v2021
    %v2070 = vadd.f32 %v1998, %v2023
    %v2071 = vadd.f32 %v1999, %v2026
    %v2072 = vadd.f32 %v2000, %v2028
    %v2073 = vadd.f32 %v2001, %v2031
    %v2074 = vadd.f32 %v2002, %v2033
    %v2075 = vadd.f32 %v2003, %v2036
    %v2076 = vadd.f32 %v2004, %v2038
    %v2077 = vadd.f32 %v2005, %v2041
    %v2078 = vadd.f32 %v2006, %v2043
    %v2079 = vadd.f32 %v2007, %v2046
    %v2080 = vadd.f32 %v2008, %v2048
    %2097 = vrot.lane.b32.xlu0 %v2065, 127
    %v2098 = vpop.permute.xlu0 %2097
    %2099 = vrot.lane.b32.xlu0 %v2066, 127
    %v2100 = vpop.permute.xlu0 %2099
    %2101 = vrot.lane.b32.xlu0 %v2067, 127
    %v2102 = vpop.permute.xlu0 %2101
    %2103 = vrot.lane.b32.xlu0 %v2068, 127
    %v2104 = vpop.permute.xlu0 %2103
    %2105 = vrot.lane.b32.xlu0 %v2069, 127
    %v2106 = vpop.permute.xlu0 %2105
    %2107 = vrot.lane.b32.xlu0 %v2070, 127
    %v2108 = vpop.permute.xlu0 %2107
    %2109 = vrot.lane.b32.xlu0 %v2071, 127
    %v2110 = vpop.permute.xlu0 %2109
    %2111 = vrot.lane.b32.xlu0 %v2072, 127
    %v2112 = vpop.permute.xlu0 %2111
    %2113 = vrot.lane.b32.xlu0 %v2073, 127
    %v2114 = vpop.permute.xlu0 %2113
    %2115 = vrot.lane.b32.xlu0 %v2074, 127
    %v2116 = vpop.permute.xlu0 %2115
    %2117 = vrot.lane.b32.xlu0 %v2075, 127
    %v2118 = vpop.permute.xlu0 %2117
    %2119 = vrot.lane.b32.xlu0 %v2076, 127
    %v2120 = vpop.permute.xlu0 %2119
    %2121 = vrot.lane.b32.xlu0 %v2077, 127
    %v2122 = vpop.permute.xlu0 %2121
    %2123 = vrot.lane.b32.xlu0 %v2078, 127
    %v2124 = vpop.permute.xlu0 %2123
    %2125 = vrot.lane.b32.xlu0 %v2079, 127
    %v2126 = vpop.permute.xlu0 %2125
    %2127 = vrot.lane.b32.xlu0 %v2080, 127
    %v2128 = vpop.permute.xlu0 %2127
    %v2145 = vadd.f32 %v2065, %v2098
    %v2146 = vadd.f32 %v2066, %v2100
    %v2147 = vadd.f32 %v2067, %v2102
    %v2148 = vadd.f32 %v2068, %v2104
    %v2149 = vadd.f32 %v2069, %v2106
    %v2150 = vadd.f32 %v2070, %v2108
    %v2151 = vadd.f32 %v2071, %v2110
    %v2152 = vadd.f32 %v2072, %v2112
    %v2153 = vadd.f32 %v2073, %v2114
    %v2154 = vadd.f32 %v2074, %v2116
    %v2155 = vadd.f32 %v2075, %v2118
    %v2156 = vadd.f32 %v2076, %v2120
    %v2157 = vadd.f32 %v2077, %v2122
    %v2158 = vadd.f32 %v2078, %v2124
    %v2159 = vadd.f32 %v2079, %v2126
    %v2160 = vadd.f32 %v2080, %v2128
    %2161 = vrot.lane.b32.xlu0 %v2065, 126
    %v2162 = vpop.permute.xlu0 %2161
    %2163 = vrot.lane.b32.xlu0 %v2066, 126
    %v2164 = vpop.permute.xlu0 %2163
    %2165 = vrot.lane.b32.xlu0 %v2067, 126
    %v2166 = vpop.permute.xlu0 %2165
    %2167 = vrot.lane.b32.xlu0 %v2068, 126
    %v2168 = vpop.permute.xlu0 %2167
    %2169 = vrot.lane.b32.xlu0 %v2069, 126
    %v2170 = vpop.permute.xlu0 %2169
    %2171 = vrot.lane.b32.xlu0 %v2070, 126
    %v2172 = vpop.permute.xlu0 %2171
    %2173 = vrot.lane.b32.xlu0 %v2071, 126
    %v2174 = vpop.permute.xlu0 %2173
    %2175 = vrot.lane.b32.xlu0 %v2072, 126
    %v2176 = vpop.permute.xlu0 %2175
    %2177 = vrot.lane.b32.xlu0 %v2073, 126
    %v2178 = vpop.permute.xlu0 %2177
    %2179 = vrot.lane.b32.xlu0 %v2074, 126
    %v2180 = vpop.permute.xlu0 %2179
    %2181 = vrot.lane.b32.xlu0 %v2075, 126
    %v2182 = vpop.permute.xlu0 %2181
    %2183 = vrot.lane.b32.xlu0 %v2076, 126
    %v2184 = vpop.permute.xlu0 %2183
    %2185 = vrot.lane.b32.xlu0 %v2077, 126
    %v2186 = vpop.permute.xlu0 %2185
    %2187 = vrot.lane.b32.xlu0 %v2078, 126
    %v2188 = vpop.permute.xlu0 %2187
    %2189 = vrot.lane.b32.xlu0 %v2079, 126
    %v2190 = vpop.permute.xlu0 %2189
    %2191 = vrot.lane.b32.xlu0 %v2080, 126
    %v2192 = vpop.permute.xlu0 %2191
    %v2209 = vadd.f32 %v2145, %v2162
    %v2210 = vadd.f32 %v2146, %v2164
    %v2211 = vadd.f32 %v2147, %v2166
    %v2212 = vadd.f32 %v2148, %v2168
    %v2213 = vadd.f32 %v2149, %v2170
    %v2214 = vadd.f32 %v2150, %v2172
    %v2215 = vadd.f32 %v2151, %v2174
    %v2216 = vadd.f32 %v2152, %v2176
    %v2217 = vadd.f32 %v2153, %v2178
    %v2218 = vadd.f32 %v2154, %v2180
    %v2219 = vadd.f32 %v2155, %v2182
    %v2220 = vadd.f32 %v2156, %v2184
    %v2221 = vadd.f32 %v2157, %v2186
    %v2222 = vadd.f32 %v2158, %v2188
    %v2223 = vadd.f32 %v2159, %v2190
    %v2224 = vadd.f32 %v2160, %v2192
    %v2225 = vmul.f32 %v2209, 0.11111111
    %v2226 = vmul.f32 %v2210, 0.11111111
    %v2227 = vmul.f32 %v2211, 0.11111111
    %v2228 = vmul.f32 %v2212, 0.11111111
    %v2229 = vmul.f32 %v2213, 0.11111111
    %v2230 = vmul.f32 %v2214, 0.11111111
    %v2231 = vmul.f32 %v2215, 0.11111111
    %v2232 = vmul.f32 %v2216, 0.11111111
    %v2233 = vmul.f32 %v2217, 0.11111111
    %v2234 = vmul.f32 %v2218, 0.11111111
    %v2235 = vmul.f32 %v2219, 0.11111111
    %v2236 = vmul.f32 %v2220, 0.11111111
    %v2237 = vmul.f32 %v2221, 0.11111111
    %v2238 = vmul.f32 %v2222, 0.11111111
    %v2239 = vmul.f32 %v2223, 0.11111111
    %v2240 = vmul.f32 %v2224, 0.11111111
    %v2241 = vmul.f32 %v1489, %v1489
    %v2242 = vmul.f32 %v1490, %v1490
    %v2243 = vmul.f32 %v1491, %v1491
    %v2244 = vmul.f32 %v1492, %v1492
    %v2245 = vmul.f32 %v1493, %v1493
    %v2246 = vmul.f32 %v1494, %v1494
    %v2247 = vmul.f32 %v1495, %v1495
    %v2248 = vmul.f32 %v1496, %v1496
    %v2249 = vmul.f32 %v1497, %v1497
    %v2250 = vmul.f32 %v1498, %v1498
    %v2251 = vmul.f32 %v1499, %v1499
    %v2252 = vmul.f32 %v1500, %v1500
    %v2253 = vmul.f32 %v1501, %v1501
    %v2254 = vmul.f32 %v1502, %v1502
    %v2255 = vmul.f32 %v1503, %v1503
    %v2256 = vmul.f32 %v1504, %v1504
    %v2257 = vsub.f32 %v2225, %v2241
    %v2258 = vsub.f32 %v2226, %v2242
    %v2259 = vsub.f32 %v2227, %v2243
    %v2260 = vsub.f32 %v2228, %v2244
    %v2261 = vsub.f32 %v2229, %v2245
    %v2262 = vsub.f32 %v2230, %v2246
    %v2263 = vsub.f32 %v2231, %v2247
    %v2264 = vsub.f32 %v2232, %v2248
    %v2265 = vsub.f32 %v2233, %v2249
    %v2266 = vsub.f32 %v2234, %v2250
    %v2267 = vsub.f32 %v2235, %v2251
    %v2268 = vsub.f32 %v2236, %v2252
    %v2269 = vsub.f32 %v2237, %v2253
    %v2270 = vsub.f32 %v2238, %v2254
    %v2271 = vsub.f32 %v2239, %v2255
    %v2272 = vsub.f32 %v2240, %v2256
    %v2273 = vmul.f32 %v439, %v823
    %v2274 = vmul.f32 %v440, %v824
    %v2275 = vmul.f32 %v441, %v825
    %v2276 = vmul.f32 %v442, %v826
    %v2277 = vmul.f32 %v443, %v827
    %v2278 = vmul.f32 %v444, %v828
    %v2279 = vmul.f32 %v445, %v829
    %v2280 = vmul.f32 %v446, %v830
    %v2281 = vmul.f32 %v447, %v831
    %v2282 = vmul.f32 %v448, %v832
    %v2283 = vmul.f32 %v449, %v833
    %v2284 = vmul.f32 %v450, %v834
    %v2285 = vmul.f32 %v451, %v835
    %v2286 = vmul.f32 %v452, %v836
    %v2287 = vmul.f32 %v453, %v837
    %v2288 = vmul.f32 %v454, %v838
    %v2289 = vmul.f32 %v455, %v839
    %v2290 = vmul.f32 %v456, %v840
    %v2291 = vmul.f32 %v457, %v841
    %v2292 = vmul.f32 %v458, %v842
    %v2293 = vmul.f32 %v459, %v843
    %v2294 = vmul.f32 %v460, %v844
    %v2295 = vmul.f32 %v461, %v845
    %v2296 = vmul.f32 %v462, %v846
    %v2321 = vrot.slane %v2273, 1
    %v2322 = vrot.slane %v2274, 1
    %v2323 = vsel %vm871, %v2321, %v2322
    %v2324 = vrot.slane %v2275, 1
    %v2325 = vsel %vm871, %v2322, %v2324
    %v2326 = vrot.slane %v2276, 1
    %v2327 = vrot.slane %v2277, 1
    %v2328 = vsel %vm871, %v2326, %v2327
    %v2329 = vrot.slane %v2278, 1
    %v2330 = vsel %vm871, %v2327, %v2329
    %v2331 = vrot.slane %v2279, 1
    %v2332 = vrot.slane %v2280, 1
    %v2333 = vsel %vm871, %v2331, %v2332
    %v2334 = vrot.slane %v2281, 1
    %v2335 = vsel %vm871, %v2332, %v2334
    %v2336 = vrot.slane %v2282, 1
    %v2337 = vrot.slane %v2283, 1
    %v2338 = vsel %vm871, %v2336, %v2337
    %v2339 = vrot.slane %v2284, 1
    %v2340 = vsel %vm871, %v2337, %v2339
    %v2341 = vrot.slane %v2285, 1
    %v2342 = vrot.slane %v2286, 1
    %v2343 = vsel %vm871, %v2341, %v2342
    %v2344 = vrot.slane %v2287, 1
    %v2345 = vsel %vm871, %v2342, %v2344
    %v2346 = vrot.slane %v2288, 1
    %v2347 = vrot.slane %v2289, 1
    %v2348 = vsel %vm871, %v2346, %v2347
    %v2349 = vrot.slane %v2290, 1
    %v2350 = vsel %vm871, %v2347, %v2349
    %v2351 = vrot.slane %v2291, 1
    %v2352 = vrot.slane %v2292, 1
    %v2353 = vsel %vm871, %v2351, %v2352
    %v2354 = vrot.slane %v2293, 1
    %v2355 = vsel %vm871, %v2352, %v2354
    %v2356 = vrot.slane %v2294, 1
    %v2357 = vrot.slane %v2295, 1
    %v2358 = vsel %vm871, %v2356, %v2357
    %v2359 = vrot.slane %v2296, 1
    %v2360 = vsel %vm871, %v2357, %v2359
    %v2377 = vadd.f32 %v2273, %v2323
    %v2378 = vadd.f32 %v2274, %v2325
    %v2379 = vadd.f32 %v2276, %v2328
    %v2380 = vadd.f32 %v2277, %v2330
    %v2381 = vadd.f32 %v2279, %v2333
    %v2382 = vadd.f32 %v2280, %v2335
    %v2383 = vadd.f32 %v2282, %v2338
    %v2384 = vadd.f32 %v2283, %v2340
    %v2385 = vadd.f32 %v2285, %v2343
    %v2386 = vadd.f32 %v2286, %v2345
    %v2387 = vadd.f32 %v2288, %v2348
    %v2388 = vadd.f32 %v2289, %v2350
    %v2389 = vadd.f32 %v2291, %v2353
    %v2390 = vadd.f32 %v2292, %v2355
    %v2391 = vadd.f32 %v2294, %v2358
    %v2392 = vadd.f32 %v2295, %v2360
    %v2393 = vrot.slane %v2273, 2
    %v2394 = vrot.slane %v2274, 2
    %v2395 = vsel %vm944, %v2393, %v2394
    %v2396 = vrot.slane %v2275, 2
    %v2397 = vsel %vm944, %v2394, %v2396
    %v2398 = vrot.slane %v2276, 2
    %v2399 = vrot.slane %v2277, 2
    %v2400 = vsel %vm944, %v2398, %v2399
    %v2401 = vrot.slane %v2278, 2
    %v2402 = vsel %vm944, %v2399, %v2401
    %v2403 = vrot.slane %v2279, 2
    %v2404 = vrot.slane %v2280, 2
    %v2405 = vsel %vm944, %v2403, %v2404
    %v2406 = vrot.slane %v2281, 2
    %v2407 = vsel %vm944, %v2404, %v2406
    %v2408 = vrot.slane %v2282, 2
    %v2409 = vrot.slane %v2283, 2
    %v2410 = vsel %vm944, %v2408, %v2409
    %v2411 = vrot.slane %v2284, 2
    %v2412 = vsel %vm944, %v2409, %v2411
    %v2413 = vrot.slane %v2285, 2
    %v2414 = vrot.slane %v2286, 2
    %v2415 = vsel %vm944, %v2413, %v2414
    %v2416 = vrot.slane %v2287, 2
    %v2417 = vsel %vm944, %v2414, %v2416
    %v2418 = vrot.slane %v2288, 2
    %v2419 = vrot.slane %v2289, 2
    %v2420 = vsel %vm944, %v2418, %v2419
    %v2421 = vrot.slane %v2290, 2
    %v2422 = vsel %vm944, %v2419, %v2421
    %v2423 = vrot.slane %v2291, 2
    %v2424 = vrot.slane %v2292, 2
    %v2425 = vsel %vm944, %v2423, %v2424
    %v2426 = vrot.slane %v2293, 2
    %v2427 = vsel %vm944, %v2424, %v2426
    %v2428 = vrot.slane %v2294, 2
    %v2429 = vrot.slane %v2295, 2
    %v2430 = vsel %vm944, %v2428, %v2429
    %v2431 = vrot.slane %v2296, 2
    %v2432 = vsel %vm944, %v2429, %v2431
    %v2449 = vadd.f32 %v2377, %v2395
    %v2450 = vadd.f32 %v2378, %v2397
    %v2451 = vadd.f32 %v2379, %v2400
    %v2452 = vadd.f32 %v2380, %v2402
    %v2453 = vadd.f32 %v2381, %v2405
    %v2454 = vadd.f32 %v2382, %v2407
    %v2455 = vadd.f32 %v2383, %v2410
    %v2456 = vadd.f32 %v2384, %v2412
    %v2457 = vadd.f32 %v2385, %v2415
    %v2458 = vadd.f32 %v2386, %v2417
    %v2459 = vadd.f32 %v2387, %v2420
    %v2460 = vadd.f32 %v2388, %v2422
    %v2461 = vadd.f32 %v2389, %v2425
    %v2462 = vadd.f32 %v2390, %v2427
    %v2463 = vadd.f32 %v2391, %v2430
    %v2464 = vadd.f32 %v2392, %v2432
    %2481 = vrot.lane.b32.xlu0 %v2449, 127
    %v2482 = vpop.permute.xlu0 %2481
    %2483 = vrot.lane.b32.xlu0 %v2450, 127
    %v2484 = vpop.permute.xlu0 %2483
    %2485 = vrot.lane.b32.xlu0 %v2451, 127
    %v2486 = vpop.permute.xlu0 %2485
    %2487 = vrot.lane.b32.xlu0 %v2452, 127
    %v2488 = vpop.permute.xlu0 %2487
    %2489 = vrot.lane.b32.xlu0 %v2453, 127
    %v2490 = vpop.permute.xlu0 %2489
    %2491 = vrot.lane.b32.xlu0 %v2454, 127
    %v2492 = vpop.permute.xlu0 %2491
    %2493 = vrot.lane.b32.xlu0 %v2455, 127
    %v2494 = vpop.permute.xlu0 %2493
    %2495 = vrot.lane.b32.xlu0 %v2456, 127
    %v2496 = vpop.permute.xlu0 %2495
    %2497 = vrot.lane.b32.xlu0 %v2457, 127
    %v2498 = vpop.permute.xlu0 %2497
    %2499 = vrot.lane.b32.xlu0 %v2458, 127
    %v2500 = vpop.permute.xlu0 %2499
    %2501 = vrot.lane.b32.xlu0 %v2459, 127
    %v2502 = vpop.permute.xlu0 %2501
    %2503 = vrot.lane.b32.xlu0 %v2460, 127
    %v2504 = vpop.permute.xlu0 %2503
    %2505 = vrot.lane.b32.xlu0 %v2461, 127
    %v2506 = vpop.permute.xlu0 %2505
    %2507 = vrot.lane.b32.xlu0 %v2462, 127
    %v2508 = vpop.permute.xlu0 %2507
    %2509 = vrot.lane.b32.xlu0 %v2463, 127
    %v2510 = vpop.permute.xlu0 %2509
    %2511 = vrot.lane.b32.xlu0 %v2464, 127
    %v2512 = vpop.permute.xlu0 %2511
    %v2529 = vadd.f32 %v2449, %v2482
    %v2530 = vadd.f32 %v2450, %v2484
    %v2531 = vadd.f32 %v2451, %v2486
    %v2532 = vadd.f32 %v2452, %v2488
    %v2533 = vadd.f32 %v2453, %v2490
    %v2534 = vadd.f32 %v2454, %v2492
    %v2535 = vadd.f32 %v2455, %v2494
    %v2536 = vadd.f32 %v2456, %v2496
    %v2537 = vadd.f32 %v2457, %v2498
    %v2538 = vadd.f32 %v2458, %v2500
    %v2539 = vadd.f32 %v2459, %v2502
    %v2540 = vadd.f32 %v2460, %v2504
    %v2541 = vadd.f32 %v2461, %v2506
    %v2542 = vadd.f32 %v2462, %v2508
    %v2543 = vadd.f32 %v2463, %v2510
    %v2544 = vadd.f32 %v2464, %v2512
    %2545 = vrot.lane.b32.xlu0 %v2449, 126
    %v2546 = vpop.permute.xlu0 %2545
    %2547 = vrot.lane.b32.xlu0 %v2450, 126
    %v2548 = vpop.permute.xlu0 %2547
    %2549 = vrot.lane.b32.xlu0 %v2451, 126
    %v2550 = vpop.permute.xlu0 %2549
    %2551 = vrot.lane.b32.xlu0 %v2452, 126
    %v2552 = vpop.permute.xlu0 %2551
    %2553 = vrot.lane.b32.xlu0 %v2453, 126
    %v2554 = vpop.permute.xlu0 %2553
    %2555 = vrot.lane.b32.xlu0 %v2454, 126
    %v2556 = vpop.permute.xlu0 %2555
    %2557 = vrot.lane.b32.xlu0 %v2455, 126
    %v2558 = vpop.permute.xlu0 %2557
    %2559 = vrot.lane.b32.xlu0 %v2456, 126
    %v2560 = vpop.permute.xlu0 %2559
    %2561 = vrot.lane.b32.xlu0 %v2457, 126
    %v2562 = vpop.permute.xlu0 %2561
    %2563 = vrot.lane.b32.xlu0 %v2458, 126
    %v2564 = vpop.permute.xlu0 %2563
    %2565 = vrot.lane.b32.xlu0 %v2459, 126
    %v2566 = vpop.permute.xlu0 %2565
    %2567 = vrot.lane.b32.xlu0 %v2460, 126
    %v2568 = vpop.permute.xlu0 %2567
    %2569 = vrot.lane.b32.xlu0 %v2461, 126
    %v2570 = vpop.permute.xlu0 %2569
    %2571 = vrot.lane.b32.xlu0 %v2462, 126
    %v2572 = vpop.permute.xlu0 %2571
    %2573 = vrot.lane.b32.xlu0 %v2463, 126
    %v2574 = vpop.permute.xlu0 %2573
    %2575 = vrot.lane.b32.xlu0 %v2464, 126
    %v2576 = vpop.permute.xlu0 %2575
    %v2593 = vadd.f32 %v2529, %v2546
    %v2594 = vadd.f32 %v2530, %v2548
    %v2595 = vadd.f32 %v2531, %v2550
    %v2596 = vadd.f32 %v2532, %v2552
    %v2597 = vadd.f32 %v2533, %v2554
    %v2598 = vadd.f32 %v2534, %v2556
    %v2599 = vadd.f32 %v2535, %v2558
    %v2600 = vadd.f32 %v2536, %v2560
    %v2601 = vadd.f32 %v2537, %v2562
    %v2602 = vadd.f32 %v2538, %v2564
    %v2603 = vadd.f32 %v2539, %v2566
    %v2604 = vadd.f32 %v2540, %v2568
    %v2605 = vadd.f32 %v2541, %v2570
    %v2606 = vadd.f32 %v2542, %v2572
    %v2607 = vadd.f32 %v2543, %v2574
    %v2608 = vadd.f32 %v2544, %v2576
    %v2609 = vmul.f32 %v2593, 0.11111111
    %v2610 = vmul.f32 %v2594, 0.11111111
    %v2611 = vmul.f32 %v2595, 0.11111111
    %v2612 = vmul.f32 %v2596, 0.11111111
    %v2613 = vmul.f32 %v2597, 0.11111111
    %v2614 = vmul.f32 %v2598, 0.11111111
    %v2615 = vmul.f32 %v2599, 0.11111111
    %v2616 = vmul.f32 %v2600, 0.11111111
    %v2617 = vmul.f32 %v2601, 0.11111111
    %v2618 = vmul.f32 %v2602, 0.11111111
    %v2619 = vmul.f32 %v2603, 0.11111111
    %v2620 = vmul.f32 %v2604, 0.11111111
    %v2621 = vmul.f32 %v2605, 0.11111111
    %v2622 = vmul.f32 %v2606, 0.11111111
    %v2623 = vmul.f32 %v2607, 0.11111111
    %v2624 = vmul.f32 %v2608, 0.11111111
    %v2625 = vmul.f32 %v1161, %v1489
    %v2626 = vmul.f32 %v1162, %v1490
    %v2627 = vmul.f32 %v1163, %v1491
    %v2628 = vmul.f32 %v1164, %v1492
    %v2629 = vmul.f32 %v1165, %v1493
    %v2630 = vmul.f32 %v1166, %v1494
    %v2631 = vmul.f32 %v1167, %v1495
    %v2632 = vmul.f32 %v1168, %v1496
    %v2633 = vmul.f32 %v1169, %v1497
    %v2634 = vmul.f32 %v1170, %v1498
    %v2635 = vmul.f32 %v1171, %v1499
    %v2636 = vmul.f32 %v1172, %v1500
    %v2637 = vmul.f32 %v1173, %v1501
    %v2638 = vmul.f32 %v1174, %v1502
    %v2639 = vmul.f32 %v1175, %v1503
    %v2640 = vmul.f32 %v1176, %v1504
    %v2641 = vsub.f32 %v2609, %v2625
    %v2642 = vsub.f32 %v2610, %v2626
    %v2643 = vsub.f32 %v2611, %v2627
    %v2644 = vsub.f32 %v2612, %v2628
    %v2645 = vsub.f32 %v2613, %v2629
    %v2646 = vsub.f32 %v2614, %v2630
    %v2647 = vsub.f32 %v2615, %v2631
    %v2648 = vsub.f32 %v2616, %v2632
    %v2649 = vsub.f32 %v2617, %v2633
    %v2650 = vsub.f32 %v2618, %v2634
    %v2651 = vsub.f32 %v2619, %v2635
    %v2652 = vsub.f32 %v2620, %v2636
    %v2653 = vsub.f32 %v2621, %v2637
    %v2654 = vsub.f32 %v2622, %v2638
    %v2655 = vsub.f32 %v2623, %v2639
    %v2656 = vsub.f32 %v2624, %v2640
    %v2657 = vmul.f32 %v1161, 2.0
    %v2658 = vmul.f32 %v1162, 2.0
    %v2659 = vmul.f32 %v1163, 2.0
    %v2660 = vmul.f32 %v1164, 2.0
    %v2661 = vmul.f32 %v1165, 2.0
    %v2662 = vmul.f32 %v1166, 2.0
    %v2663 = vmul.f32 %v1167, 2.0
    %v2664 = vmul.f32 %v1168, 2.0
    %v2665 = vmul.f32 %v1169, 2.0
    %v2666 = vmul.f32 %v1170, 2.0
    %v2667 = vmul.f32 %v1171, 2.0
    %v2668 = vmul.f32 %v1172, 2.0
    %v2669 = vmul.f32 %v1173, 2.0
    %v2670 = vmul.f32 %v1174, 2.0
    %v2671 = vmul.f32 %v1175, 2.0
    %v2672 = vmul.f32 %v1176, 2.0
    %v2673 = vmul.f32 %v2657, %v1489
    %v2674 = vmul.f32 %v2658, %v1490
    %v2675 = vmul.f32 %v2659, %v1491
    %v2676 = vmul.f32 %v2660, %v1492
    %v2677 = vmul.f32 %v2661, %v1493
    %v2678 = vmul.f32 %v2662, %v1494
    %v2679 = vmul.f32 %v2663, %v1495
    %v2680 = vmul.f32 %v2664, %v1496
    %v2681 = vmul.f32 %v2665, %v1497
    %v2682 = vmul.f32 %v2666, %v1498
    %v2683 = vmul.f32 %v2667, %v1499
    %v2684 = vmul.f32 %v2668, %v1500
    %v2685 = vmul.f32 %v2669, %v1501
    %v2686 = vmul.f32 %v2670, %v1502
    %v2687 = vmul.f32 %v2671, %v1503
    %v2688 = vmul.f32 %v2672, %v1504
    %v2689 = vadd.f32 %v2673, 0.0001
    %v2690 = vadd.f32 %v2674, 0.0001
    %v2691 = vadd.f32 %v2675, 0.0001
    %v2692 = vadd.f32 %v2676, 0.0001
    %v2693 = vadd.f32 %v2677, 0.0001
    %v2694 = vadd.f32 %v2678, 0.0001
    %v2695 = vadd.f32 %v2679, 0.0001
    %v2696 = vadd.f32 %v2680, 0.0001
    %v2697 = vadd.f32 %v2681, 0.0001
    %v2698 = vadd.f32 %v2682, 0.0001
    %v2699 = vadd.f32 %v2683, 0.0001
    %v2700 = vadd.f32 %v2684, 0.0001
    %v2701 = vadd.f32 %v2685, 0.0001
    %v2702 = vadd.f32 %v2686, 0.0001
    %v2703 = vadd.f32 %v2687, 0.0001
    %v2704 = vadd.f32 %v2688, 0.0001
    %v2705 = vmul.f32 %v2641, 2.0
    %v2706 = vmul.f32 %v2642, 2.0
    %v2707 = vmul.f32 %v2643, 2.0
    %v2708 = vmul.f32 %v2644, 2.0
    %v2709 = vmul.f32 %v2645, 2.0
    %v2710 = vmul.f32 %v2646, 2.0
    %v2711 = vmul.f32 %v2647, 2.0
    %v2712 = vmul.f32 %v2648, 2.0
    %v2713 = vmul.f32 %v2649, 2.0
    %v2714 = vmul.f32 %v2650, 2.0
    %v2715 = vmul.f32 %v2651, 2.0
    %v2716 = vmul.f32 %v2652, 2.0
    %v2717 = vmul.f32 %v2653, 2.0
    %v2718 = vmul.f32 %v2654, 2.0
    %v2719 = vmul.f32 %v2655, 2.0
    %v2720 = vmul.f32 %v2656, 2.0
    %v2721 = vadd.f32 %v2705, 0.0009
    %v2722 = vadd.f32 %v2706, 0.0009
    %v2723 = vadd.f32 %v2707, 0.0009
    %v2724 = vadd.f32 %v2708, 0.0009
    %v2725 = vadd.f32 %v2709, 0.0009
    %v2726 = vadd.f32 %v2710, 0.0009
    %v2727 = vadd.f32 %v2711, 0.0009
    %v2728 = vadd.f32 %v2712, 0.0009
    %v2729 = vadd.f32 %v2713, 0.0009
    %v2730 = vadd.f32 %v2714, 0.0009
    %v2731 = vadd.f32 %v2715, 0.0009
    %v2732 = vadd.f32 %v2716, 0.0009
    %v2733 = vadd.f32 %v2717, 0.0009
    %v2734 = vadd.f32 %v2718, 0.0009
    %v2735 = vadd.f32 %v2719, 0.0009
    %v2736 = vadd.f32 %v2720, 0.0009
    %v2737 = vmul.f32 %v2689, %v2721
    %v2738 = vmul.f32 %v2690, %v2722
    %v2739 = vmul.f32 %v2691, %v2723
    %v2740 = vmul.f32 %v2692, %v2724
    %v2741 = vmul.f32 %v2693, %v2725
    %v2742 = vmul.f32 %v2694, %v2726
    %v2743 = vmul.f32 %v2695, %v2727
    %v2744 = vmul.f32 %v2696, %v2728
    %v2745 = vmul.f32 %v2697, %v2729
    %v2746 = vmul.f32 %v2698, %v2730
    %v2747 = vmul.f32 %v2699, %v2731
    %v2748 = vmul.f32 %v2700, %v2732
    %v2749 = vmul.f32 %v2701, %v2733
    %v2750 = vmul.f32 %v2702, %v2734
    %v2751 = vmul.f32 %v2703, %v2735
    %v2752 = vmul.f32 %v2704, %v2736
    %v2753 = vadd.f32 %v1857, %v2241
    %v2754 = vadd.f32 %v1858, %v2242
    %v2755 = vadd.f32 %v1859, %v2243
    %v2756 = vadd.f32 %v1860, %v2244
    %v2757 = vadd.f32 %v1861, %v2245
    %v2758 = vadd.f32 %v1862, %v2246
    %v2759 = vadd.f32 %v1863, %v2247
    %v2760 = vadd.f32 %v1864, %v2248
    %v2761 = vadd.f32 %v1865, %v2249
    %v2762 = vadd.f32 %v1866, %v2250
    %v2763 = vadd.f32 %v1867, %v2251
    %v2764 = vadd.f32 %v1868, %v2252
    %v2765 = vadd.f32 %v1869, %v2253
    %v2766 = vadd.f32 %v1870, %v2254
    %v2767 = vadd.f32 %v1871, %v2255
    %v2768 = vadd.f32 %v1872, %v2256
    %v2769 = vadd.f32 %v2753, 0.0001
    %v2770 = vadd.f32 %v2754, 0.0001
    %v2771 = vadd.f32 %v2755, 0.0001
    %v2772 = vadd.f32 %v2756, 0.0001
    %v2773 = vadd.f32 %v2757, 0.0001
    %v2774 = vadd.f32 %v2758, 0.0001
    %v2775 = vadd.f32 %v2759, 0.0001
    %v2776 = vadd.f32 %v2760, 0.0001
    %v2777 = vadd.f32 %v2761, 0.0001
    %v2778 = vadd.f32 %v2762, 0.0001
    %v2779 = vadd.f32 %v2763, 0.0001
    %v2780 = vadd.f32 %v2764, 0.0001
    %v2781 = vadd.f32 %v2765, 0.0001
    %v2782 = vadd.f32 %v2766, 0.0001
    %v2783 = vadd.f32 %v2767, 0.0001
    %v2784 = vadd.f32 %v2768, 0.0001
    %v2785 = vadd.f32 %v1873, %v2257
    %v2786 = vadd.f32 %v1874, %v2258
    %v2787 = vadd.f32 %v1875, %v2259
    %v2788 = vadd.f32 %v1876, %v2260
    %v2789 = vadd.f32 %v1877, %v2261
    %v2790 = vadd.f32 %v1878, %v2262
    %v2791 = vadd.f32 %v1879, %v2263
    %v2792 = vadd.f32 %v1880, %v2264
    %v2793 = vadd.f32 %v1881, %v2265
    %v2794 = vadd.f32 %v1882, %v2266
    %v2795 = vadd.f32 %v1883, %v2267
    %v2796 = vadd.f32 %v1884, %v2268
    %v2797 = vadd.f32 %v1885, %v2269
    %v2798 = vadd.f32 %v1886, %v2270
    %v2799 = vadd.f32 %v1887, %v2271
    %v2800 = vadd.f32 %v1888, %v2272
    %v2801 = vadd.f32 %v2785, 0.0009
    %v2802 = vadd.f32 %v2786, 0.0009
    %v2803 = vadd.f32 %v2787, 0.0009
    %v2804 = vadd.f32 %v2788, 0.0009
    %v2805 = vadd.f32 %v2789, 0.0009
    %v2806 = vadd.f32 %v2790, 0.0009
    %v2807 = vadd.f32 %v2791, 0.0009
    %v2808 = vadd.f32 %v2792, 0.0009
    %v2809 = vadd.f32 %v2793, 0.0009
    %v2810 = vadd.f32 %v2794, 0.0009
    %v2811 = vadd.f32 %v2795, 0.0009
    %v2812 = vadd.f32 %v2796, 0.0009
    %v2813 = vadd.f32 %v2797, 0.0009
    %v2814 = vadd.f32 %v2798, 0.0009
    %v2815 = vadd.f32 %v2799, 0.0009
    %v2816 = vadd.f32 %v2800, 0.0009
    %v2817 = vmul.f32 %v2769, %v2801
    %v2818 = vmul.f32 %v2770, %v2802
    %v2819 = vmul.f32 %v2771, %v2803
    %v2820 = vmul.f32 %v2772, %v2804
    %v2821 = vmul.f32 %v2773, %v2805
    %v2822 = vmul.f32 %v2774, %v2806
    %v2823 = vmul.f32 %v2775, %v2807
    %v2824 = vmul.f32 %v2776, %v2808
    %v2825 = vmul.f32 %v2777, %v2809
    %v2826 = vmul.f32 %v2778, %v2810
    %v2827 = vmul.f32 %v2779, %v2811
    %v2828 = vmul.f32 %v2780, %v2812
    %v2829 = vmul.f32 %v2781, %v2813
    %v2830 = vmul.f32 %v2782, %v2814
    %v2831 = vmul.f32 %v2783, %v2815
    %v2832 = vmul.f32 %v2784, %v2816
    %v2833 = vrcp.pop %v2817
    %v2834 = vmul.f32 %v2817, %v2833
    %v2835 = vsub.f32 1.0, %v2834
    %v2836 = vmul.f32 %v2833, %v2835
    %v2837 = vadd.f32 %v2833, %v2836
    %vm2838 = vweird.f32 %v2817
    %vm2839 = vweird.f32 %v2833
    %vm2840 = vmor %vm2838, %vm2839
    %v2841 = vsel %vm2840, %v2833, %v2837
    %v2842 = vand.u32 2147483647, %v2817
    %vm2843 = vcmp.eq.f32.partialorder %v2842, 8.507059e+37
    %v2844 = vand.u32 %v2817, 2147483648
    %v2845 = vor.u32 1.1754944e-38, %v2844
    %v2846 = vsel %vm2843, %v2845, %v2841
    %v2847 = vmul.f32 %v2737, %v2846
    %v2848 = vrcp.pop %v2818
    %v2849 = vmul.f32 %v2818, %v2848
    %v2850 = vsub.f32 1.0, %v2849
    %v2851 = vmul.f32 %v2848, %v2850
    %v2852 = vadd.f32 %v2848, %v2851
    %vm2853 = vweird.f32 %v2818
    %vm2854 = vweird.f32 %v2848
    %vm2855 = vmor %vm2853, %vm2854
    %v2856 = vsel %vm2855, %v2848, %v2852
    %v2857 = vand.u32 2147483647, %v2818
    %vm2858 = vcmp.eq.f32.partialorder %v2857, 8.507059e+37
    %v2859 = vand.u32 %v2818, 2147483648
    %v2860 = vor.u32 1.1754944e-38, %v2859
    %v2861 = vsel %vm2858, %v2860, %v2856
    %v2862 = vmul.f32 %v2738, %v2861
    %v2863 = vrcp.pop %v2819
    %v2864 = vmul.f32 %v2819, %v2863
    %v2865 = vsub.f32 1.0, %v2864
    %v2866 = vmul.f32 %v2863, %v2865
    %v2867 = vadd.f32 %v2863, %v2866
    %vm2868 = vweird.f32 %v2819
    %vm2869 = vweird.f32 %v2863
    %vm2870 = vmor %vm2868, %vm2869
    %v2871 = vsel %vm2870, %v2863, %v2867
    %v2872 = vand.u32 2147483647, %v2819
    %vm2873 = vcmp.eq.f32.partialorder %v2872, 8.507059e+37
    %v2874 = vand.u32 %v2819, 2147483648
    %v2875 = vor.u32 1.1754944e-38, %v2874
    %v2876 = vsel %vm2873, %v2875, %v2871
    %v2877 = vmul.f32 %v2739, %v2876
    %v2878 = vrcp.pop %v2820
    %v2879 = vmul.f32 %v2820, %v2878
    %v2880 = vsub.f32 1.0, %v2879
    %v2881 = vmul.f32 %v2878, %v2880
    %v2882 = vadd.f32 %v2878, %v2881
    %vm2883 = vweird.f32 %v2820
    %vm2884 = vweird.f32 %v2878
    %vm2885 = vmor %vm2883, %vm2884
    %v2886 = vsel %vm2885, %v2878, %v2882
    %v2887 = vand.u32 2147483647, %v2820
    %vm2888 = vcmp.eq.f32.partialorder %v2887, 8.507059e+37
    %v2889 = vand.u32 %v2820, 2147483648
    %v2890 = vor.u32 1.1754944e-38, %v2889
    %v2891 = vsel %vm2888, %v2890, %v2886
    %v2892 = vmul.f32 %v2740, %v2891
    %v2893 = vrcp.pop %v2821
    %v2894 = vmul.f32 %v2821, %v2893
    %v2895 = vsub.f32 1.0, %v2894
    %v2896 = vmul.f32 %v2893, %v2895
    %v2897 = vadd.f32 %v2893, %v2896
    %vm2898 = vweird.f32 %v2821
    %vm2899 = vweird.f32 %v2893
    %vm2900 = vmor %vm2898, %vm2899
    %v2901 = vsel %vm2900, %v2893, %v2897
    %v2902 = vand.u32 2147483647, %v2821
    %vm2903 = vcmp.eq.f32.partialorder %v2902, 8.507059e+37
    %v2904 = vand.u32 %v2821, 2147483648
    %v2905 = vor.u32 1.1754944e-38, %v2904
    %v2906 = vsel %vm2903, %v2905, %v2901
    %v2907 = vmul.f32 %v2741, %v2906
    %v2908 = vrcp.pop %v2822
    %v2909 = vmul.f32 %v2822, %v2908
    %v2910 = vsub.f32 1.0, %v2909
    %v2911 = vmul.f32 %v2908, %v2910
    %v2912 = vadd.f32 %v2908, %v2911
    %vm2913 = vweird.f32 %v2822
    %vm2914 = vweird.f32 %v2908
    %vm2915 = vmor %vm2913, %vm2914
    %v2916 = vsel %vm2915, %v2908, %v2912
    %v2917 = vand.u32 2147483647, %v2822
    %vm2918 = vcmp.eq.f32.partialorder %v2917, 8.507059e+37
    %v2919 = vand.u32 %v2822, 2147483648
    %v2920 = vor.u32 1.1754944e-38, %v2919
    %v2921 = vsel %vm2918, %v2920, %v2916
    %v2922 = vmul.f32 %v2742, %v2921
    %v2923 = vrcp.pop %v2823
    %v2924 = vmul.f32 %v2823, %v2923
    %v2925 = vsub.f32 1.0, %v2924
    %v2926 = vmul.f32 %v2923, %v2925
    %v2927 = vadd.f32 %v2923, %v2926
    %vm2928 = vweird.f32 %v2823
    %vm2929 = vweird.f32 %v2923
    %vm2930 = vmor %vm2928, %vm2929
    %v2931 = vsel %vm2930, %v2923, %v2927
    %v2932 = vand.u32 2147483647, %v2823
    %vm2933 = vcmp.eq.f32.partialorder %v2932, 8.507059e+37
    %v2934 = vand.u32 %v2823, 2147483648
    %v2935 = vor.u32 1.1754944e-38, %v2934
    %v2936 = vsel %vm2933, %v2935, %v2931
    %v2937 = vmul.f32 %v2743, %v2936
    %v2938 = vrcp.pop %v2824
    %v2939 = vmul.f32 %v2824, %v2938
    %v2940 = vsub.f32 1.0, %v2939
    %v2941 = vmul.f32 %v2938, %v2940
    %v2942 = vadd.f32 %v2938, %v2941
    %vm2943 = vweird.f32 %v2824
    %vm2944 = vweird.f32 %v2938
    %vm2945 = vmor %vm2943, %vm2944
    %v2946 = vsel %vm2945, %v2938, %v2942
    %v2947 = vand.u32 2147483647, %v2824
    %vm2948 = vcmp.eq.f32.partialorder %v2947, 8.507059e+37
    %v2949 = vand.u32 %v2824, 2147483648
    %v2950 = vor.u32 1.1754944e-38, %v2949
    %v2951 = vsel %vm2948, %v2950, %v2946
    %v2952 = vmul.f32 %v2744, %v2951
    %v2953 = vrcp.pop %v2825
    %v2954 = vmul.f32 %v2825, %v2953
    %v2955 = vsub.f32 1.0, %v2954
    %v2956 = vmul.f32 %v2953, %v2955
    %v2957 = vadd.f32 %v2953, %v2956
    %vm2958 = vweird.f32 %v2825
    %vm2959 = vweird.f32 %v2953
    %vm2960 = vmor %vm2958, %vm2959
    %v2961 = vsel %vm2960, %v2953, %v2957
    %v2962 = vand.u32 2147483647, %v2825
    %vm2963 = vcmp.eq.f32.partialorder %v2962, 8.507059e+37
    %v2964 = vand.u32 %v2825, 2147483648
    %v2965 = vor.u32 1.1754944e-38, %v2964
    %v2966 = vsel %vm2963, %v2965, %v2961
    %v2967 = vmul.f32 %v2745, %v2966
    %v2968 = vrcp.pop %v2826
    %v2969 = vmul.f32 %v2826, %v2968
    %v2970 = vsub.f32 1.0, %v2969
    %v2971 = vmul.f32 %v2968, %v2970
    %v2972 = vadd.f32 %v2968, %v2971
    %vm2973 = vweird.f32 %v2826
    %vm2974 = vweird.f32 %v2968
    %vm2975 = vmor %vm2973, %vm2974
    %v2976 = vsel %vm2975, %v2968, %v2972
    %v2977 = vand.u32 2147483647, %v2826
    %vm2978 = vcmp.eq.f32.partialorder %v2977, 8.507059e+37
    %v2979 = vand.u32 %v2826, 2147483648
    %v2980 = vor.u32 1.1754944e-38, %v2979
    %v2981 = vsel %vm2978, %v2980, %v2976
    %v2982 = vmul.f32 %v2746, %v2981
    %v2983 = vrcp.pop %v2827
    %v2984 = vmul.f32 %v2827, %v2983
    %v2985 = vsub.f32 1.0, %v2984
    %v2986 = vmul.f32 %v2983, %v2985
    %v2987 = vadd.f32 %v2983, %v2986
    %vm2988 = vweird.f32 %v2827
    %vm2989 = vweird.f32 %v2983
    %vm2990 = vmor %vm2988, %vm2989
    %v2991 = vsel %vm2990, %v2983, %v2987
    %v2992 = vand.u32 2147483647, %v2827
    %vm2993 = vcmp.eq.f32.partialorder %v2992, 8.507059e+37
    %v2994 = vand.u32 %v2827, 2147483648
    %v2995 = vor.u32 1.1754944e-38, %v2994
    %v2996 = vsel %vm2993, %v2995, %v2991
    %v2997 = vmul.f32 %v2747, %v2996
    %v2998 = vrcp.pop %v2828
    %v2999 = vmul.f32 %v2828, %v2998
    %v3000 = vsub.f32 1.0, %v2999
    %v3001 = vmul.f32 %v2998, %v3000
    %v3002 = vadd.f32 %v2998, %v3001
    %vm3003 = vweird.f32 %v2828
    %vm3004 = vweird.f32 %v2998
    %vm3005 = vmor %vm3003, %vm3004
    %v3006 = vsel %vm3005, %v2998, %v3002
    %v3007 = vand.u32 2147483647, %v2828
    %vm3008 = vcmp.eq.f32.partialorder %v3007, 8.507059e+37
    %v3009 = vand.u32 %v2828, 2147483648
    %v3010 = vor.u32 1.1754944e-38, %v3009
    %v3011 = vsel %vm3008, %v3010, %v3006
    %v3012 = vmul.f32 %v2748, %v3011
    %v3013 = vrcp.pop %v2829
    %v3014 = vmul.f32 %v2829, %v3013
    %v3015 = vsub.f32 1.0, %v3014
    %v3016 = vmul.f32 %v3013, %v3015
    %v3017 = vadd.f32 %v3013, %v3016
    %vm3018 = vweird.f32 %v2829
    %vm3019 = vweird.f32 %v3013
    %vm3020 = vmor %vm3018, %vm3019
    %v3021 = vsel %vm3020, %v3013, %v3017
    %v3022 = vand.u32 2147483647, %v2829
    %vm3023 = vcmp.eq.f32.partialorder %v3022, 8.507059e+37
    %v3024 = vand.u32 %v2829, 2147483648
    %v3025 = vor.u32 1.1754944e-38, %v3024
    %v3026 = vsel %vm3023, %v3025, %v3021
    %v3027 = vmul.f32 %v2749, %v3026
    %v3028 = vrcp.pop %v2830
    %v3029 = vmul.f32 %v2830, %v3028
    %v3030 = vsub.f32 1.0, %v3029
    %v3031 = vmul.f32 %v3028, %v3030
    %v3032 = vadd.f32 %v3028, %v3031
    %vm3033 = vweird.f32 %v2830
    %vm3034 = vweird.f32 %v3028
    %vm3035 = vmor %vm3033, %vm3034
    %v3036 = vsel %vm3035, %v3028, %v3032
    %v3037 = vand.u32 2147483647, %v2830
    %vm3038 = vcmp.eq.f32.partialorder %v3037, 8.507059e+37
    %v3039 = vand.u32 %v2830, 2147483648
    %v3040 = vor.u32 1.1754944e-38, %v3039
    %v3041 = vsel %vm3038, %v3040, %v3036
    %v3042 = vmul.f32 %v2750, %v3041
    %v3043 = vrcp.pop %v2831
    %v3044 = vmul.f32 %v2831, %v3043
    %v3045 = vsub.f32 1.0, %v3044
    %v3046 = vmul.f32 %v3043, %v3045
    %v3047 = vadd.f32 %v3043, %v3046
    %vm3048 = vweird.f32 %v2831
    %vm3049 = vweird.f32 %v3043
    %vm3050 = vmor %vm3048, %vm3049
    %v3051 = vsel %vm3050, %v3043, %v3047
    %v3052 = vand.u32 2147483647, %v2831
    %vm3053 = vcmp.eq.f32.partialorder %v3052, 8.507059e+37
    %v3054 = vand.u32 %v2831, 2147483648
    %v3055 = vor.u32 1.1754944e-38, %v3054
    %v3056 = vsel %vm3053, %v3055, %v3051
    %v3057 = vmul.f32 %v2751, %v3056
    %v3058 = vrcp.pop %v2832
    %v3059 = vmul.f32 %v2832, %v3058
    %v3060 = vsub.f32 1.0, %v3059
    %v3061 = vmul.f32 %v3058, %v3060
    %v3062 = vadd.f32 %v3058, %v3061
    %vm3063 = vweird.f32 %v2832
    %vm3064 = vweird.f32 %v3058
    %vm3065 = vmor %vm3063, %vm3064
    %v3066 = vsel %vm3065, %v3058, %v3062
    %v3067 = vand.u32 2147483647, %v2832
    %vm3068 = vcmp.eq.f32.partialorder %v3067, 8.507059e+37
    %v3069 = vand.u32 %v2832, 2147483648
    %v3070 = vor.u32 1.1754944e-38, %v3069
    %v3071 = vsel %vm3068, %v3070, %v3066
    %v3072 = vmul.f32 %v2752, %v3071
    %v3073 = vsub.f32 1.0, %v2847
    %v3074 = vsub.f32 1.0, %v2862
    %v3075 = vsub.f32 1.0, %v2877
    %v3076 = vsub.f32 1.0, %v2892
    %v3077 = vsub.f32 1.0, %v2907
    %v3078 = vsub.f32 1.0, %v2922
    %v3079 = vsub.f32 1.0, %v2937
    %v3080 = vsub.f32 1.0, %v2952
    %v3081 = vsub.f32 1.0, %v2967
    %v3082 = vsub.f32 1.0, %v2982
    %v3083 = vsub.f32 1.0, %v2997
    %v3084 = vsub.f32 1.0, %v3012
    %v3085 = vsub.f32 1.0, %v3027
    %v3086 = vsub.f32 1.0, %v3042
    %v3087 = vsub.f32 1.0, %v3057
    %v3088 = vsub.f32 1.0, %v3072
    %v3089 = vmul.f32 %v3073, 0.5
    %v3090 = vmul.f32 %v3074, 0.5
    %v3091 = vmul.f32 %v3075, 0.5
    %v3092 = vmul.f32 %v3076, 0.5
    %v3093 = vmul.f32 %v3077, 0.5
    %v3094 = vmul.f32 %v3078, 0.5
    %v3095 = vmul.f32 %v3079, 0.5
    %v3096 = vmul.f32 %v3080, 0.5
    %v3097 = vmul.f32 %v3081, 0.5
    %v3098 = vmul.f32 %v3082, 0.5
    %v3099 = vmul.f32 %v3083, 0.5
    %v3100 = vmul.f32 %v3084, 0.5
    %v3101 = vmul.f32 %v3085, 0.5
    %v3102 = vmul.f32 %v3086, 0.5
    %v3103 = vmul.f32 %v3087, 0.5
    %v3104 = vmul.f32 %v3088, 0.5
    %v3105 = vmax.f32 %v3089, 0.0
    %v3106 = vmax.f32 %v3090, 0.0
    %v3107 = vmax.f32 %v3091, 0.0
    %v3108 = vmax.f32 %v3092, 0.0
    %v3109 = vmax.f32 %v3093, 0.0
    %v3110 = vmax.f32 %v3094, 0.0
    %v3111 = vmax.f32 %v3095, 0.0
    %v3112 = vmax.f32 %v3096, 0.0
    %v3113 = vmax.f32 %v3097, 0.0
    %v3114 = vmax.f32 %v3098, 0.0
    %v3115 = vmax.f32 %v3099, 0.0
    %v3116 = vmax.f32 %v3100, 0.0
    %v3117 = vmax.f32 %v3101, 0.0
    %v3118 = vmax.f32 %v3102, 0.0
    %v3119 = vmax.f32 %v3103, 0.0
    %v3120 = vmax.f32 %v3104, 0.0
    %v3121 = vmin.f32 %v3105, 1.0
    %v3122 = vmin.f32 %v3106, 1.0
    %v3123 = vmin.f32 %v3107, 1.0
    %v3124 = vmin.f32 %v3108, 1.0
    %v3125 = vmin.f32 %v3109, 1.0
    %v3126 = vmin.f32 %v3110, 1.0
    %v3127 = vmin.f32 %v3111, 1.0
    %v3128 = vmin.f32 %v3112, 1.0
    %v3129 = vmin.f32 %v3113, 1.0
    %v3130 = vmin.f32 %v3114, 1.0
    %v3131 = vmin.f32 %v3115, 1.0
    %v3132 = vmin.f32 %v3116, 1.0
    %v3133 = vmin.f32 %v3117, 1.0
    %v3134 = vmin.f32 %v3118, 1.0
    %v3135 = vmin.f32 %v3119, 1.0
    %v3136 = vmin.f32 %v3120, 1.0
    %vm3137 = vcmask 130048
    %3138 = vst.msk [vmem:[#allocation7] sm:$0xff] %vm3137, %v3121
    %3139 = vst.msk [vmem:[#allocation7 + $0x8] sm:$0xff] %vm3137, %v3122
    %3140 = vst.msk [vmem:[#allocation7 + $0x10] sm:$0xff] %vm3137, %v3123
    %3141 = vst.msk [vmem:[#allocation7 + $0x18] sm:$0xff] %vm3137, %v3124
    %3142 = vst.msk [vmem:[#allocation7 + $0x20] sm:$0xff] %vm3137, %v3125
    %3143 = vst.msk [vmem:[#allocation7 + $0x28] sm:$0xff] %vm3137, %v3126
    %3144 = vst.msk [vmem:[#allocation7 + $0x30] sm:$0xff] %vm3137, %v3127
    %3145 = vst.msk [vmem:[#allocation7 + $0x38] sm:$0xff] %vm3137, %v3128
    %3146 = vst.msk [vmem:[#allocation7 + $0x40] sm:$0xff] %vm3137, %v3129
    %3147 = vst.msk [vmem:[#allocation7 + $0x48] sm:$0xff] %vm3137, %v3130
    %3148 = vst.msk [vmem:[#allocation7 + $0x50] sm:$0xff] %vm3137, %v3131
    %3149 = vst.msk [vmem:[#allocation7 + $0x58] sm:$0xff] %vm3137, %v3132
    %3150 = vst.msk [vmem:[#allocation7 + $0x60] sm:$0xff] %vm3137, %v3133
    %3151 = vst.msk [vmem:[#allocation7 + $0x68] sm:$0xff] %vm3137, %v3134
    %3152 = vst.msk [vmem:[#allocation7 + $0x70] sm:$0xff] %vm3137, %v3135
    %3153 = vst.msk [vmem:[#allocation7 + $0x78] sm:$0xff] %vm3137, %v3136
    // Predicated region
    $region18: #{tpu_custom_call.1} parent=1 // pred_check
      _
    $region19: #{tpu_custom_call.1} parent=1 // pred_check_branch
      %3155 = sbr.rel (0) target = $region21
    $region20: #{tpu_custom_call.1} parent=1 // pred_region
      %3157 = vsyncadd [#allocation4], 0
      %s3158 = sshll.u32 [#allocation7], 4
      %s3159 = int_to_ptr.vmem [resolvable:$true] %s3158
      %s3160 = sshll.u32 %s2, 4
      %s3161 = int_to_ptr.hbm [resolvable:$true] %s3160
      %3166 = dma.vmem_to_hbm [thread:$0]  %s3159, 2048, %s3161, [#allocation4], 128, 128, 8
    $region21: #{tpu_custom_call.1} parent=1 // pred_fallthru
      _
    // Predicated region
    $region22: #{tpu_custom_call.1} parent=1 // pred_check
      _
    $region23: #{tpu_custom_call.1} parent=1 // pred_check_branch
      %3168 = sbr.rel (0) target = $region25
    $region24: #{tpu_custom_call.1} parent=1 // pred_region
      %3170 = dma.done [#allocation4], 2048
    $region25: #{tpu_custom_call.1} parent=1 // pred_fallthru
      _
    %3171 = vsyncpa [#allocation3], 1
    %3172 = vsyncpa [#allocation6], 1
    %3173 = vsyncpa [#allocation4], 1

</llo_original>
